<compile_context>
chip_gen: v7x
topology: tpu7x:2x2x1
jax: 0.10.0
libtpu: 0.0.40
codegen_flags: <defaults>
</compile_context>

<pallas_src>
import math
import functools

import jax
import jax.numpy as jnp
from jax.experimental import pallas as pl
from jax.experimental.pallas import tpu as pltpu


_SQRT_2_OVER_PI = math.sqrt(2.0 / math.pi)


def _gelu_tanh(x):
    # tanh-approximate GELU (torch.nn.functional.gelu(..., approximate='tanh'))
    return 0.5 * x * (1.0 + jnp.tanh(_SQRT_2_OVER_PI * (x + 0.044715 * x * x * x)))


def gptj_mlp_kernel(x_ref, w_in_ref, b_in_ref, w_out_ref, b_out_ref,
                    o_ref, acc_ref):
    # x_ref:     (tm, H)   bf16 row tile of hidden_states (resident across k)
    # w_in_ref:  (H, ti)   bf16 fc_in  weight slab for this I-chunk
    # b_in_ref:  (1, ti)   f32  fc_in  bias slab
    # w_out_ref: (ti, H)   bf16 fc_out weight slab for this I-chunk
    # b_out_ref: (1, H)    f32  fc_out bias
    # o_ref:     (tm, H)   output tile (written once, at k == last)
    # acc_ref:   (tm, H)   f32 VMEM accumulator (resident across k)
    k = pl.program_id(1)

    @pl.when(k == 0)
    def _():
        # Seed the accumulator with the fc_out bias: added exactly once, and
        # removes the extra (tm, H) add at finalize.
        acc_ref[...] = jnp.broadcast_to(b_out_ref[...], acc_ref.shape)

    # fc_in slab: (tm, H) @ (H, ti) -> (tm, ti), f32 accumulation on the MXU.
    h = jnp.dot(x_ref[...], w_in_ref[...], preferred_element_type=jnp.float32)
    h = _gelu_tanh(h + b_in_ref[...])          # f32 bias add + tanh-GELU

    # fc_out slab: (tm, ti) @ (ti, H) -> (tm, H), accumulated over I-chunks.
    acc_ref[...] += jnp.dot(h.astype(w_out_ref.dtype), w_out_ref[...],
                            preferred_element_type=jnp.float32)

    @pl.when(k == pl.num_programs(1) - 1)
    def _():
        o_ref[...] = acc_ref[...].astype(o_ref.dtype)


def _pick_tile(total, desired, align):
    """Largest multiple of `align` that is <= desired and divides `total`,
    or `total` itself (full-extent block) if no such tile exists."""
    t = min(desired, total)
    if t >= total:
        return total
    t = (t // align) * align
    while t >= align:
        if total % t == 0:
            return t
        t -= align
    return total


def _vmem_budget_bytes():
    cap = 64 * 1024 * 1024
    try:
        cap = int(pltpu.get_tpu_info().vmem_capacity_bytes)
    except Exception:
        pass
    if cap >= 128 * 1024 * 1024:   # v5e / v6e: 128 MiB physical VMEM
        return 96 * 1024 * 1024
    return 56 * 1024 * 1024        # v7x: 64 MiB physical VMEM, leave headroom


def _block_vmem_bytes(tm, ti, H, out_bytes):
    # Double-buffered inputs/outputs (BlockSpec pipelining) + f32 accumulator.
    x_b = 2 * tm * H * 2
    w_in_b = 2 * H * ti * 2
    b_in_b = 2 * ti * 4
    w_out_b = 2 * ti * H * 2
    b_out_b = 2 * H * 4
    out_b = 2 * tm * H * out_bytes
    acc_b = tm * H * 4
    return x_b + w_in_b + b_in_b + w_out_b + b_out_b + out_b + acc_b


@functools.partial(jax.jit, static_argnames=("tm", "ti", "vmem_limit", "out_dtype"))
def _gptj_mlp_call(x, w_in, b_in, w_out, b_out, *, tm, ti, vmem_limit, out_dtype):
    S, H = x.shape
    I = w_in.shape[1]
    grid = (S // tm, I // ti)

    return pl.pallas_call(
        gptj_mlp_kernel,
        out_shape=jax.ShapeDtypeStruct((S, H), out_dtype),
        grid_spec=pltpu.PrefetchScalarGridSpec(
            num_scalar_prefetch=0,
            grid=grid,
            in_specs=[
                pl.BlockSpec((tm, H), lambda i, k: (i, 0)),   # x row tile (resident over k)
                pl.BlockSpec((H, ti), lambda i, k: (0, k)),   # fc_in weight slab
                pl.BlockSpec((1, ti), lambda i, k: (0, k)),   # fc_in bias slab
                pl.BlockSpec((ti, H), lambda i, k: (k, 0)),   # fc_out weight slab
                pl.BlockSpec((1, H), lambda i, k: (0, 0)),    # fc_out bias
            ],
            out_specs=pl.BlockSpec((tm, H), lambda i, k: (i, 0)),
            scratch_shapes=[pltpu.VMEM((tm, H), jnp.float32)],
        ),
        compiler_params=pltpu.CompilerParams(
            dimension_semantics=("parallel", "arbitrary"),
            vmem_limit_bytes=vmem_limit,
        ),
    )(x, w_in, b_in, w_out, b_out)


def gptj_mlp(x, w_in, b_in, w_out, b_out, *, tm=None, ti=None,
             out_dtype=None, vmem_limit_bytes=None):
    S, H = x.shape
    Hi, I = w_in.shape
    assert Hi == H and w_out.shape == (I, H)
    assert b_in.size == I and b_out.size == H

    out_dtype = jnp.dtype(x.dtype if out_dtype is None else out_dtype)
    out_bytes = out_dtype.itemsize

    budget = _vmem_budget_bytes() if vmem_limit_bytes is None else int(vmem_limit_bytes)
    desired_tm = 512 if tm is None else tm
    desired_ti = (1024 if budget >= 96 * 1024 * 1024 else 512) if ti is None else ti

    # tm: second-to-last block dim -> multiple of 8 (or full extent), divides S.
    tm = _pick_tile(S, desired_tm, 8)
    # ti: last block dim of w_in/b_in -> multiple of 128 (or full extent), divides I.
    ti = _pick_tile(I, desired_ti, 128)

    # v7x megacore: ensure the "parallel" row axis has >= 2 tiles when possible.
    if S // tm < 2:
        tm2 = _pick_tile(S, tm // 2, 8)
        if tm2 < tm and S % tm2 == 0 and S // tm2 >= 2:
            tm = tm2

    # Shrink tiles if the block footprint would blow the VMEM budget.
    while tm > 8 and _block_vmem_bytes(tm, ti, H, out_bytes) > budget:
        new_tm = _pick_tile(S, tm // 2, 8)
        if new_tm >= tm:
            break
        tm = new_tm
    while ti > 128 and _block_vmem_bytes(tm, ti, H, out_bytes) > budget:
        new_ti = _pick_tile(I, ti // 2, 128)
        if new_ti >= ti:
            break
        ti = new_ti

    # Hot path expects bf16 x / weights; only cast if the caller did not
    # pre-store them in bf16 (casts below are no-ops when dtypes match).
    cdt = jnp.bfloat16
    x_c = x if x.dtype == cdt else x.astype(cdt)
    w_in_c = w_in if w_in.dtype == cdt else w_in.astype(cdt)
    w_out_c = w_out if w_out.dtype == cdt else w_out.astype(cdt)
    b_in_c = b_in.reshape(1, I).astype(jnp.float32)
    b_out_c = b_out.reshape(1, H).astype(jnp.float32)

    return _gptj_mlp_call(x_c, w_in_c, b_in_c, w_out_c, b_out_c,
                          tm=int(tm), ti=int(ti), vmem_limit=int(budget),
                          out_dtype=out_dtype)


def _reference(x, w_in, b_in, w_out, b_out):
    # Same precision policy as the kernel: bf16 matmuls, f32 accumulation,
    # f32 GELU and bias adds.
    h = jnp.dot(x.astype(jnp.bfloat16), w_in.astype(jnp.bfloat16),
                preferred_element_type=jnp.float32)
    h = _gelu_tanh(h + b_in.reshape(1, -1).astype(jnp.float32))
    y = jnp.dot(h.astype(jnp.bfloat16), w_out.astype(jnp.bfloat16),
                preferred_element_type=jnp.float32)
    return y + b_out.reshape(1, -1).astype(jnp.float32)


if __name__ == "__main__":
    # Small GPT-J-like shapes: seq=256, hidden=256, intermediate=4*hidden=1024.
    S, H, I = 256, 256, 1024

    key = jax.random.PRNGKey(0)
    kx, kw1, kb1, kw2, kb2 = jax.random.split(key, 5)

    x = jax.random.normal(kx, (S, H), dtype=jnp.float32)
    w_in = jax.random.normal(kw1, (H, I), dtype=jnp.float32) * (1.0 / math.sqrt(H))
    b_in = jax.random.normal(kb1, (1, I), dtype=jnp.float32) * 0.02
    w_out = jax.random.normal(kw2, (I, H), dtype=jnp.float32) * (1.0 / math.sqrt(I))
    b_out = jax.random.normal(kb2, (1, H), dtype=jnp.float32) * 0.02

    # Pre-cast activations/weights to bf16 OUTSIDE the hot path (perf review:
    # no per-call f32->bf16 weight conversion inside the jitted wrapper).
    x_bf16 = jax.block_until_ready(x.astype(jnp.bfloat16))
    w_in_bf16 = jax.block_until_ready(w_in.astype(jnp.bfloat16))
    w_out_bf16 = jax.block_until_ready(w_out.astype(jnp.bfloat16))

    # Auto tile selection exercises both grid axes at this scale
    # (tm -> 128 for >=2 row tiles, ti -> 512 or 1024 depending on the chip).
    out = gptj_mlp(x_bf16, w_in_bf16, b_in, w_out_bf16, b_out,
                   out_dtype=jnp.float32)
    out = jax.block_until_ready(out)

    ref = _reference(x_bf16, w_in_bf16, b_in, w_out_bf16, b_out)
    assert out.shape == (S, H)
    assert out.dtype == jnp.float32
    assert jnp.allclose(out, ref, rtol=2e-2, atol=2e-2), "mismatch vs reference"

    print("KERNEL_OK")
</pallas_src>

<mosaic_0001>
module attributes {stable_mosaic.version = 11 : i64} {
  func.func @gptj_mlp_kernel(%arg0: i32, %arg1: i32, %arg2: memref<128x256xbf16, #tpu.memory_space<vmem>>, %arg3: memref<256x512xbf16, #tpu.memory_space<vmem>>, %arg4: memref<1x512xf32, #tpu.memory_space<vmem>>, %arg5: memref<512x256xbf16, #tpu.memory_space<vmem>>, %arg6: memref<1x256xf32, #tpu.memory_space<vmem>>, %arg7: memref<128x256xf32, #tpu.memory_space<vmem>>, %arg8: memref<128x256xf32, #tpu.memory_space<vmem>>) attributes {dimension_semantics = [#tpu.dimension_semantics<parallel>, #tpu.dimension_semantics<arbitrary>], iteration_bounds = array<i64: 2, 2>, scalar_prefetch = 0 : i64, scratch_operands = 1 : i64, tpu.core_type = #tpu.core_type<tc>, window_params = [{transform_indices = @transform_0, window_bounds = array<i64: 128, 256>}, {transform_indices = @transform_1, window_bounds = array<i64: 256, 512>}, {transform_indices = @transform_2, window_bounds = array<i64: 1, 512>}, {transform_indices = @transform_3, window_bounds = array<i64: 512, 256>}, {pipeline_mode = #tpu.pipeline_mode<synchronous>, transform_indices = @transform_4, window_bounds = array<i64: 1, 256>}, {transform_indices = @transform_5, window_bounds = array<i64: 128, 256>}]} {
    %c0_i32 = arith.constant 0 : i32
    %0 = arith.cmpi eq, %arg1, %c0_i32 : i32
    %1 = arith.extui %0 : i1 to i32
    %c0_i32_0 = arith.constant 0 : i32
    %2 = arith.cmpi ne, %1, %c0_i32_0 : i32
    scf.if %2 {
      %c0_18 = arith.constant 0 : index
      %c0_19 = arith.constant 0 : index
      %31 = vector.load %arg6[%c0_18, %c0_19] : memref<1x256xf32, #tpu.memory_space<vmem>>, vector<1x256xf32>
      %32 = vector.shape_cast %31 : vector<1x256xf32> to vector<1x256xf32>
      %33 = vector.broadcast %32 : vector<1x256xf32> to vector<128x256xf32>
      %c0_20 = arith.constant 0 : index
      %c0_21 = arith.constant 0 : index
      %34 = vector.load %arg8[%c0_20, %c0_21] : memref<128x256xf32, #tpu.memory_space<vmem>>, vector<128x256xf32>
      tpu.vector_store %arg8[%c0_20, %c0_21], %33 {strides = array<i32>} : memref<128x256xf32, #tpu.memory_space<vmem>>, vector<128x256xf32>,
    } else {
    }
    %c0 = arith.constant 0 : index
    %c0_1 = arith.constant 0 : index
    %3 = vector.load %arg2[%c0, %c0_1] : memref<128x256xbf16, #tpu.memory_space<vmem>>, vector<128x256xbf16>
    %c0_2 = arith.constant 0 : index
    %c0_3 = arith.constant 0 : index
    %4 = vector.load %arg3[%c0_2, %c0_3] : memref<256x512xbf16, #tpu.memory_space<vmem>>, vector<256x512xbf16>
    %cst = arith.constant dense<0.000000e+00> : vector<128x512xf32>
    %5 = tpu.matmul %3, %4, %cst {dimension_numbers = #tpu.dot_dimension_numbers<[1], [0], [0], [1], [0, 0, 1, 1], [], []>} : vector<128x256xbf16>, vector<256x512xbf16>, vector<128x512xf32> -> vector<128x512xf32>
    %c0_4 = arith.constant 0 : index
    %c0_5 = arith.constant 0 : index
    %6 = vector.load %arg4[%c0_4, %c0_5] : memref<1x512xf32, #tpu.memory_space<vmem>>, vector<1x512xf32>
    %7 = vector.broadcast %6 : vector<1x512xf32> to vector<128x512xf32>
    %8 = arith.addf %5, %7 : vector<128x512xf32>
    %cst_6 = arith.constant 5.000000e-01 : f32
    %9 = vector.broadcast %cst_6 : f32 to vector<128x512xf32>
    %10 = arith.mulf %9, %8 : vector<128x512xf32>
    %cst_7 = arith.constant 4.471500e-02 : f32
    %11 = vector.broadcast %cst_7 : f32 to vector<128x512xf32>
    %12 = arith.mulf %11, %8 : vector<128x512xf32>
    %13 = arith.mulf %12, %8 : vector<128x512xf32>
    %14 = arith.mulf %13, %8 : vector<128x512xf32>
    %15 = arith.addf %8, %14 : vector<128x512xf32>
    %cst_8 = arith.constant 0.797884583 : f32
    %16 = vector.broadcast %cst_8 : f32 to vector<128x512xf32>
    %17 = arith.mulf %16, %15 : vector<128x512xf32>
    %18 = math.tanh %17 : vector<128x512xf32>
    %cst_9 = arith.constant 1.000000e+00 : f32
    %19 = vector.broadcast %cst_9 : f32 to vector<128x512xf32>
    %20 = arith.addf %19, %18 : vector<128x512xf32>
    %21 = arith.mulf %10, %20 : vector<128x512xf32>
    %c0_10 = arith.constant 0 : index
    %c0_11 = arith.constant 0 : index
    %22 = vector.load %arg8[%c0_10, %c0_11] : memref<128x256xf32, #tpu.memory_space<vmem>>, vector<128x256xf32>
    %23 = arith.truncf %21 : vector<128x512xf32> to vector<128x512xbf16>
    %c0_12 = arith.constant 0 : index
    %c0_13 = arith.constant 0 : index
    %24 = vector.load %arg5[%c0_12, %c0_13] : memref<512x256xbf16, #tpu.memory_space<vmem>>, vector<512x256xbf16>
    %cst_14 = arith.constant dense<0.000000e+00> : vector<128x256xf32>
    %25 = tpu.matmul %23, %24, %cst_14 {dimension_numbers = #tpu.dot_dimension_numbers<[1], [0], [0], [1], [0, 0, 1, 1], [], []>} : vector<128x512xbf16>, vector<512x256xbf16>, vector<128x256xf32> -> vector<128x256xf32>
    %26 = arith.addf %22, %25 : vector<128x256xf32>
    %c0_15 = arith.constant 0 : index
    %c0_16 = arith.constant 0 : index
    %27 = vector.load %arg8[%c0_15, %c0_16] : memref<128x256xf32, #tpu.memory_space<vmem>>, vector<128x256xf32>
    tpu.vector_store %arg8[%c0_15, %c0_16], %26 {strides = array<i32>} : memref<128x256xf32, #tpu.memory_space<vmem>>, vector<128x256xf32>,
    %c1_i32 = arith.constant 1 : i32
    %28 = arith.cmpi eq, %arg1, %c1_i32 : i32
    %29 = arith.extui %28 : i1 to i32
    %c0_i32_17 = arith.constant 0 : i32
    %30 = arith.cmpi ne, %29, %c0_i32_17 : i32
    scf.if %30 {
      %c0_18 = arith.constant 0 : index
      %c0_19 = arith.constant 0 : index
      %31 = vector.load %arg8[%c0_18, %c0_19] : memref<128x256xf32, #tpu.memory_space<vmem>>, vector<128x256xf32>
      %c0_20 = arith.constant 0 : index
      %c0_21 = arith.constant 0 : index
      %32 = vector.load %arg7[%c0_20, %c0_21] : memref<128x256xf32, #tpu.memory_space<vmem>>, vector<128x256xf32>
      tpu.vector_store %arg7[%c0_20, %c0_21], %31 {strides = array<i32>} : memref<128x256xf32, #tpu.memory_space<vmem>>, vector<128x256xf32>,
    } else {
    }
    return
  }
  func.func @transform_0(%arg0: i32, %arg1: i32) -> (i32, i32) {
    %c0_i32 = arith.constant 0 : i32
    %c0_i32_0 = arith.constant 0 : i32
    return %arg0, %c0_i32 : i32, i32
  }
  func.func @transform_1(%arg0: i32, %arg1: i32) -> (i32, i32) {
    %c0_i32 = arith.constant 0 : i32
    %c0_i32_0 = arith.constant 0 : i32
    return %c0_i32, %arg1 : i32, i32
  }
  func.func @transform_2(%arg0: i32, %arg1: i32) -> (i32, i32) {
    %c0_i32 = arith.constant 0 : i32
    %c0_i32_0 = arith.constant 0 : i32
    return %c0_i32, %arg1 : i32, i32
  }
  func.func @transform_3(%arg0: i32, %arg1: i32) -> (i32, i32) {
    %c0_i32 = arith.constant 0 : i32
    %c0_i32_0 = arith.constant 0 : i32
    return %arg1, %c0_i32 : i32, i32
  }
  func.func @transform_4(%arg0: i32, %arg1: i32) -> (i32, i32) {
    %c0_i32 = arith.constant 0 : i32
    %c0_i32_0 = arith.constant 0 : i32
    %c0_i32_1 = arith.constant 0 : i32
    return %c0_i32, %c0_i32_0 : i32, i32
  }
  func.func @transform_5(%arg0: i32, %arg1: i32) -> (i32, i32) {
    %c0_i32 = arith.constant 0 : i32
    %c0_i32_0 = arith.constant 0 : i32
    return %arg0, %c0_i32 : i32, i32
  }
}

</mosaic_0001>

<llo_original>
// kernel: _gptj_mlp_call.1
$region0: #{_gptj_mlp_call.1}
  #allocation0 [shape = 'u32[]', space=smem, size = 0x4, offset = 0x4, fixed_abs, tag = 'smem constant byte address 0x4 - core index']
  #allocation1 [shape = 'u32[144,128]{1,0:T(1,128)}', space=vmem, size = 0x12000, scoped, tag = 'internal scratch']
  #allocation2 [shape = 'f32[128,256]{1,0:T(8,128)}', space=vmem, size = 0x20000, scoped, tag = 'scratch operand']
  %s0 = inlined_call_operand.hbm [shape: bf16[256,256], index: 0, kind: input, shape index: {}]
  %s1 = inlined_call_operand.hbm [shape: bf16[256,1024], index: 1, kind: input, shape index: {}]
  %s2 = inlined_call_operand.hbm [shape: f32[1,1024], index: 2, kind: input, shape index: {}]
  %s3 = inlined_call_operand.hbm [shape: bf16[1024,256], index: 3, kind: input, shape index: {}]
  %s4 = inlined_call_operand.vmem [shape: f32[1,256], index: 4, kind: input, shape index: {}]
  %s5 = inlined_call_operand.hbm [shape: f32[256,256], index: 5, kind: output, shape index: {}]
  %s6 = sld [smem:[#allocation0]]
  $region77: #{_gptj_mlp_call.1} parent=0
    _
  %s8 = ssub.s32 1, %s6
  %s9 = scalar_select 0, %s8, %s6
  $region1: #{_gptj_mlp_call.1} parent=0
    #allocation3 [shape = 'u8[131072]{0}', space=vmem, size = 0x20000, scoped, tag = 'input window, operand 0']
    #allocation4 [shape = 's32[2]{0}', space=sflag, size = 0x8, scoped, tag = 'scoped memory for _gptj_mlp_call.1']
    #allocation5 [shape = 's32[2]{0}', space=sflag, size = 0x8, scoped, tag = 'scoped memory for _gptj_mlp_call.1']
    #allocation6 [shape = 'u8[524288]{0}', space=vmem, size = 0x80000, scoped, tag = 'input window, operand 1']
    #allocation7 [shape = 's32[2]{0}', space=sflag, size = 0x8, scoped, tag = 'scoped memory for _gptj_mlp_call.1']
    #allocation8 [shape = 'u8[4096]{0}', space=vmem, size = 0x1000, scoped, tag = 'input window, operand 2']
    #allocation9 [shape = 'u8[524288]{0}', space=vmem, size = 0x80000, scoped, tag = 'input window, operand 3']
    #allocation10 [shape = 's32[2]{0}', space=sflag, size = 0x8, scoped, tag = 'scoped memory for _gptj_mlp_call.1']
    #allocation11 [shape = 'u8[262144]{0}', space=vmem, size = 0x40000, scoped, tag = 'output window, operand 0']
    %10 = vsyncpa [#allocation4], 0
    %s11 = scalar_lea.sflag [#allocation4], 1
    %12 = vsyncpa %s11, 0
    %13 = vsyncpa [#allocation7], 0
    %s14 = scalar_lea.sflag [#allocation7], 1
    %15 = vsyncpa %s14, 0
    %16 = vsyncpa [#allocation10], 0
    %s17 = scalar_lea.sflag [#allocation10], 1
    %18 = vsyncpa %s17, 0
    %19 = vsyncpa [#allocation5], 0
    %s20 = scalar_lea.sflag [#allocation5], 1
    %21 = vsyncpa %s20, 0
    loop: start=0, step=1, limit=6
    $region2: #{_gptj_mlp_call.1} parent=1 // loop_pre_header
      _
    $region3: #{_gptj_mlp_call.1} parent=1 // loop_header
      %s23 = sphi 0, %s27
      %p24 = scmp.ge.s32.totalorder %s23, 6
      %s30 = sphi 0, %s42
      %s31 = sphi 0, %s38
      %s32 = sphi 0, %s30
      %s33 = sphi 0, %s31
      %s34 = sphi 0, %s32
      %s35 = sphi 0, %s33
      %s45 = sphi 0, %s47
      %s48 = sphi 0, %s45
      %s49 = sphi 0, %s48
      %s65 = sphi 0, %s49
      %s71 = sphi 0, %s73
      %s74 = sphi 0, %s71
      %s75 = sphi 0, %s74
      %s91 = sphi 0, %s75
      %s97 = sphi 0, %s99
      %s100 = sphi 0, %s97
      %s101 = sphi 0, %s100
      %s117 = sphi 0, %s101
      %s123 = sphi 0, %s125
      %s126 = sphi 0, %s123
      %s127 = sphi 0, %s126
      %s143 = sphi 0, %s127
      %s147 = sphi 0, %s147
      %s149 = sphi 0, %s147
      %s150 = sphi 0, %s149
      %s164 = sphi 0, %s150
      %s170 = sphi 0, %s172
      %s173 = sphi 0, %s170
      %s174 = sphi 0, %s173
      %s190 = sphi 0, %s174
    $region4: #{_gptj_mlp_call.1} parent=1 // loop_header_branch
      %26 = sbr.rel (%p24) target = $region8
    $region5: #{_gptj_mlp_call.1} parent=1 // loop_body
      %s28 = ssub.s32 %s23, 1
      %s29 = ssub.s32 %s23, 2
      %s36 = sadd.s32 1, %s31
      %p37 = scmp.ge.s32.totalorder %s36, 2
      %s38 = scalar_select %p37, 0, %s36
      %s39 = sadd.s32 1, %s30
      %s40 = scalar_select %p37, %s39, %s30
      %p41 = scmp.ge.s32.totalorder %s40, 2
      %s42 = scalar_select %p41, 0, %s40
      %s43 = ssub.s32 %s30, %s42
      %p44 = scmp.eq.s32.totalorder %s43, 0
      %s46 = sadd.s32 %s45, 1
      %s47 = scalar_select %p44, %s45, %s46
      %p50 = pneg %p44
      %p51 = scmp.eq.s32.totalorder %s23, 3
      %p52 = por %p50, %p51
      %p53 = scmp.ne.s32.totalorder %s45, %s48
      %p54 = scmp.eq.s32.totalorder %s23, 0
      %p55 = por %p53, %p54
      %p56 = scmp.ne.s32.totalorder %s45, %s48
      %p57 = scmp.eq.s32.totalorder %s28, 3
      %p58 = por %p56, %p57
      %p59 = scmp.ne.s32.totalorder %s48, %s49
      %p60 = scmp.eq.s32.totalorder %s28, 0
      %p61 = por %p59, %p60
      %p62 = scmp.ne.s32.totalorder %s48, %s49
      %p63 = scmp.eq.s32.totalorder %s29, 3
      %p64 = por %p62, %p63
      %p66 = scmp.ne.s32.totalorder %s49, %s65
      %p67 = scmp.eq.s32.totalorder %s29, 0
      %p68 = por %p66, %p67
      %s69 = ssub.s32 %s31, %s38
      %p70 = scmp.eq.s32.totalorder %s69, 0
      %s72 = sadd.s32 %s71, 1
      %s73 = scalar_select %p70, %s71, %s72
      %p76 = pneg %p70
      %p77 = scmp.eq.s32.totalorder %s23, 3
      %p78 = por %p76, %p77
      %p79 = scmp.ne.s32.totalorder %s71, %s74
      %p80 = scmp.eq.s32.totalorder %s23, 0
      %p81 = por %p79, %p80
      %p82 = scmp.ne.s32.totalorder %s71, %s74
      %p83 = scmp.eq.s32.totalorder %s28, 3
      %p84 = por %p82, %p83
      %p85 = scmp.ne.s32.totalorder %s74, %s75
      %p86 = scmp.eq.s32.totalorder %s28, 0
      %p87 = por %p85, %p86
      %p88 = scmp.ne.s32.totalorder %s74, %s75
      %p89 = scmp.eq.s32.totalorder %s29, 3
      %p90 = por %p88, %p89
      %p92 = scmp.ne.s32.totalorder %s75, %s91
      %p93 = scmp.eq.s32.totalorder %s29, 0
      %p94 = por %p92, %p93
      %s95 = ssub.s32 %s31, %s38
      %p96 = scmp.eq.s32.totalorder %s95, 0
      %s98 = sadd.s32 %s97, 1
      %s99 = scalar_select %p96, %s97, %s98
      %p102 = pneg %p96
      %p103 = scmp.eq.s32.totalorder %s23, 3
      %p104 = por %p102, %p103
      %p105 = scmp.ne.s32.totalorder %s97, %s100
      %p106 = scmp.eq.s32.totalorder %s23, 0
      %p107 = por %p105, %p106
      %p108 = scmp.ne.s32.totalorder %s97, %s100
      %p109 = scmp.eq.s32.totalorder %s28, 3
      %p110 = por %p108, %p109
      %p111 = scmp.ne.s32.totalorder %s100, %s101
      %p112 = scmp.eq.s32.totalorder %s28, 0
      %p113 = por %p111, %p112
      %p114 = scmp.ne.s32.totalorder %s100, %s101
      %p115 = scmp.eq.s32.totalorder %s29, 3
      %p116 = por %p114, %p115
      %p118 = scmp.ne.s32.totalorder %s101, %s117
      %p119 = scmp.eq.s32.totalorder %s29, 0
      %p120 = por %p118, %p119
      %s121 = ssub.s32 %s31, %s38
      %p122 = scmp.eq.s32.totalorder %s121, 0
      %s124 = sadd.s32 %s123, 1
      %s125 = scalar_select %p122, %s123, %s124
      %p128 = pneg %p122
      %p129 = scmp.eq.s32.totalorder %s23, 3
      %p130 = por %p128, %p129
      %p131 = scmp.ne.s32.totalorder %s123, %s126
      %p132 = scmp.eq.s32.totalorder %s23, 0
      %p133 = por %p131, %p132
      %p134 = scmp.ne.s32.totalorder %s123, %s126
      %p135 = scmp.eq.s32.totalorder %s28, 3
      %p136 = por %p134, %p135
      %p137 = scmp.ne.s32.totalorder %s126, %s127
      %p138 = scmp.eq.s32.totalorder %s28, 0
      %p139 = por %p137, %p138
      %p140 = scmp.ne.s32.totalorder %s126, %s127
      %p141 = scmp.eq.s32.totalorder %s29, 3
      %p142 = por %p140, %p141
      %p144 = scmp.ne.s32.totalorder %s127, %s143
      %p145 = scmp.eq.s32.totalorder %s29, 0
      %p146 = por %p144, %p145
      %s148 = sadd.s32 %s147, 1
      %p151 = scmp.eq.s32.totalorder %s23, 3
      %p152 = scmp.ne.s32.totalorder %s147, %s149
      %p153 = scmp.eq.s32.totalorder %s23, 0
      %p154 = por %p152, %p153
      %p155 = scmp.ne.s32.totalorder %s147, %s149
      %p156 = scmp.eq.s32.totalorder %s28, 3
      %p157 = por %p155, %p156
      %p158 = scmp.ne.s32.totalorder %s149, %s150
      %p159 = scmp.eq.s32.totalorder %s28, 0
      %p160 = por %p158, %p159
      %p161 = scmp.ne.s32.totalorder %s149, %s150
      %p162 = scmp.eq.s32.totalorder %s29, 3
      %p163 = por %p161, %p162
      %p165 = scmp.ne.s32.totalorder %s150, %s164
      %p166 = scmp.eq.s32.totalorder %s29, 0
      %p167 = por %p165, %p166
      %s168 = ssub.s32 %s30, %s42
      %p169 = scmp.eq.s32.totalorder %s168, 0
      %s171 = sadd.s32 %s170, 1
      %s172 = scalar_select %p169, %s170, %s171
      %p175 = pneg %p169
      %p176 = scmp.eq.s32.totalorder %s23, 3
      %p177 = por %p175, %p176
      %p178 = scmp.ne.s32.totalorder %s170, %s173
      %p179 = scmp.eq.s32.totalorder %s23, 0
      %p180 = por %p178, %p179
      %p181 = scmp.ne.s32.totalorder %s170, %s173
      %p182 = scmp.eq.s32.totalorder %s28, 3
      %p183 = por %p181, %p182
      %p184 = scmp.ne.s32.totalorder %s173, %s174
      %p185 = scmp.eq.s32.totalorder %s28, 0
      %p186 = por %p184, %p185
      %p187 = scmp.ne.s32.totalorder %s173, %s174
      %p188 = scmp.eq.s32.totalorder %s29, 3
      %p189 = por %p187, %p188
      %p191 = scmp.ne.s32.totalorder %s174, %s190
      %p192 = scmp.eq.s32.totalorder %s29, 0
      %p193 = por %p191, %p192
      %p194 = scmp.le.s32.totalorder 1, %s23
      %p195 = scmp.lt.s32.totalorder %s23, 5
      %p196 = pnand %p194, %p195
      %p197 = pneg %p196
      // Predicated region
      $region9: #{_gptj_mlp_call.1} parent=5 // pred_check
        _
      $region10: #{_gptj_mlp_call.1} parent=5 // pred_check_branch
        %199 = sbr.rel (%p196) target = $region12
      $region11: #{_gptj_mlp_call.1} parent=5 // pred_region
        %s200 = ssub.s32 %s23, 1
        // Predicated region
        $region13: #{_gptj_mlp_call.1} parent=11 // pred_check
          %p201 = pneg %p160
        $region14: #{_gptj_mlp_call.1} parent=11 // pred_check_branch
          %203 = sbr.rel (%p201) target = $region16
        $region15: #{_gptj_mlp_call.1} parent=11 // pred_region
          _
        $region16: #{_gptj_mlp_call.1} parent=11 // pred_fallthru
          _
      $region12: #{_gptj_mlp_call.1} parent=5 // pred_fallthru
        _
      %p204 = scmp.lt.s32.totalorder %s23, 4
      // Predicated region
      $region17: #{_gptj_mlp_call.1} parent=5 // pred_check
        %p205 = pneg %p204
      $region18: #{_gptj_mlp_call.1} parent=5 // pred_check_branch
        %207 = sbr.rel (%p205) target = $region20
      $region19: #{_gptj_mlp_call.1} parent=5 // pred_region
        // Predicated region
        $region21: #{_gptj_mlp_call.1} parent=19 // pred_check
          %p208 = pneg %p55
        $region22: #{_gptj_mlp_call.1} parent=19 // pred_check_branch
          %210 = sbr.rel (%p208) target = $region24
        $region23: #{_gptj_mlp_call.1} parent=19 // pred_region
          %s211 = sand.u32 %s45, 1
          %s212 = scalar_lea.sflag [#allocation4], %s211
          %s213 = sand.u32 %s45, 1
          %s214 = smul.addr %s213, 128
          %s215 = scalar_lea.vmem [#allocation3], %s214
          %s216 = smul.u32 16, %s30
          %s218 = ssub.s32 2048, 2048
          %219 = vsyncadd %s212, %s218
          %s220 = smul.addr %s216, 2
          %s221 = smul.addr %s220, 64
          %s222 = scalar_lea.hbm %s0, %s221
          %s223 = sshll.u32 %s215, 4
          %s224 = int_to_ptr.vmem [resolvable:$true] %s223
          %229 = dma.hbm_to_vmem [thread:$0]  %s222, 2048, %s224, %s212, 128, 128, 8
        $region24: #{_gptj_mlp_call.1} parent=19 // pred_fallthru
          _
        // Predicated region
        $region25: #{_gptj_mlp_call.1} parent=19 // pred_check
          %p230 = pneg %p81
        $region26: #{_gptj_mlp_call.1} parent=19 // pred_check_branch
          %232 = sbr.rel (%p230) target = $region28
        $region27: #{_gptj_mlp_call.1} parent=19 // pred_region
          %s233 = sand.u32 %s23, 1
          %s234 = scalar_lea.sflag [#allocation7], %s233
          %s235 = sand.u32 %s71, 1
          %s236 = smul.addr %s235, 512
          %s237 = scalar_lea.vmem [#allocation6], %s236
          %s238 = smul.u32 4, %s31
          %s240 = ssub.s32 8192, 8192
          %241 = vsyncadd %s234, %s240
          %s242 = smul.addr %s238, 64
          %s243 = scalar_lea.hbm %s1, %s242
          %s244 = sshll.u32 %s237, 4
          %s245 = int_to_ptr.vmem [resolvable:$true] %s244
          %250 = dma.hbm_to_vmem [thread:$0]  %s243, 8192, %s245, %s234, 512, 256, 16
        $region28: #{_gptj_mlp_call.1} parent=19 // pred_fallthru
          _
        // Predicated region
        $region29: #{_gptj_mlp_call.1} parent=19 // pred_check
          %p251 = pneg %p107
        $region30: #{_gptj_mlp_call.1} parent=19 // pred_check_branch
          %253 = sbr.rel (%p251) target = $region32
        $region31: #{_gptj_mlp_call.1} parent=19 // pred_region
          %s254 = sand.u32 %s23, 1
          %s255 = scalar_lea.sflag [#allocation7], %s254
          %s256 = sand.u32 %s97, 1
          %s257 = smul.addr %s256, 4
          %s258 = scalar_lea.vmem [#allocation8], %s257
          %s259 = smul.u32 4, %s31
          %s261 = ssub.s32 64, 64
          %262 = vsyncadd %s255, %s261
          %s263 = smul.addr %s259, 16
          %s264 = scalar_lea.hbm %s2, %s263
          %s266 = sshll.u32 %s258, 4
          %s267 = int_to_ptr.vmem [resolvable:$true] %s266
          %269 = dma.hbm_to_vmem [thread:$0]  %s264, 64, %s267, %s255
        $region32: #{_gptj_mlp_call.1} parent=19 // pred_fallthru
          _
        // Predicated region
        $region33: #{_gptj_mlp_call.1} parent=19 // pred_check
          %p270 = pneg %p133
        $region34: #{_gptj_mlp_call.1} parent=19 // pred_check_branch
          %272 = sbr.rel (%p270) target = $region36
        $region35: #{_gptj_mlp_call.1} parent=19 // pred_region
          %s273 = sand.u32 %s123, 1
          %s274 = scalar_lea.sflag [#allocation10], %s273
          %s275 = sand.u32 %s123, 1
          %s276 = smul.addr %s275, 512
          %s277 = scalar_lea.vmem [#allocation9], %s276
          %s278 = smul.u32 64, %s31
          %s280 = ssub.s32 8192, 8192
          %281 = vsyncadd %s274, %s280
          %s282 = smul.addr %s278, 2
          %s283 = smul.addr %s282, 64
          %s284 = scalar_lea.hbm %s3, %s283
          %s285 = sshll.u32 %s277, 4
          %s286 = int_to_ptr.vmem [resolvable:$true] %s285
          %291 = dma.hbm_to_vmem [thread:$0]  %s284, 8192, %s286, %s274, 128, 128, 8
        $region36: #{_gptj_mlp_call.1} parent=19 // pred_fallthru
          _
      $region20: #{_gptj_mlp_call.1} parent=5 // pred_fallthru
        _
      %p292 = scmp.le.s32.totalorder 1, %s23
      %p293 = scmp.lt.s32.totalorder %s23, 5
      %p294 = pnand %p292, %p293
      %p295 = pneg %p294
      // Predicated region
      $region37: #{_gptj_mlp_call.1} parent=5 // pred_check
        _
      $region38: #{_gptj_mlp_call.1} parent=5 // pred_check_branch
        %297 = sbr.rel (%p294) target = $region40
      $region39: #{_gptj_mlp_call.1} parent=5 // pred_region
        %s298 = ssub.s32 %s23, 1
        %s299 = sand.u32 %s48, 1
        %s300 = scalar_lea.sflag [#allocation4], %s299
        %s301 = sand.u32 %s48, 1
        %s302 = smul.addr %s301, 128
        %s303 = scalar_lea.vmem [#allocation3], %s302
        // Predicated region
        $region41: #{_gptj_mlp_call.1} parent=39 // pred_check
          %p304 = pneg %p61
        $region42: #{_gptj_mlp_call.1} parent=39 // pred_check_branch
          %306 = sbr.rel (%p304) target = $region44
        $region43: #{_gptj_mlp_call.1} parent=39 // pred_region
          %307 = dma.done %s300, 2048
        $region44: #{_gptj_mlp_call.1} parent=39 // pred_fallthru
          _
        %s308 = sand.u32 %s28, 1
        %s309 = scalar_lea.sflag [#allocation7], %s308
        %s310 = sand.u32 %s74, 1
        %s311 = smul.addr %s310, 512
        %s312 = scalar_lea.vmem [#allocation6], %s311
        // Predicated region
        $region45: #{_gptj_mlp_call.1} parent=39 // pred_check
          %p313 = pneg %p87
        $region46: #{_gptj_mlp_call.1} parent=39 // pred_check_branch
          %315 = sbr.rel (%p313) target = $region48
        $region47: #{_gptj_mlp_call.1} parent=39 // pred_region
          %316 = dma.done %s309, 8192
        $region48: #{_gptj_mlp_call.1} parent=39 // pred_fallthru
          _
        %s317 = sand.u32 %s28, 1
        %s318 = scalar_lea.sflag [#allocation7], %s317
        %s319 = sand.u32 %s100, 1
        %s320 = smul.addr %s319, 4
        %s321 = scalar_lea.vmem [#allocation8], %s320
        // Predicated region
        $region49: #{_gptj_mlp_call.1} parent=39 // pred_check
          %p322 = pneg %p113
        $region50: #{_gptj_mlp_call.1} parent=39 // pred_check_branch
          %324 = sbr.rel (%p322) target = $region52
        $region51: #{_gptj_mlp_call.1} parent=39 // pred_region
          %325 = dma.done %s318, 64
        $region52: #{_gptj_mlp_call.1} parent=39 // pred_fallthru
          _
        %s326 = sand.u32 %s126, 1
        %s327 = scalar_lea.sflag [#allocation10], %s326
        %s328 = sand.u32 %s126, 1
        %s329 = smul.addr %s328, 512
        %s330 = scalar_lea.vmem [#allocation9], %s329
        // Predicated region
        $region53: #{_gptj_mlp_call.1} parent=39 // pred_check
          %p331 = pneg %p139
        $region54: #{_gptj_mlp_call.1} parent=39 // pred_check_branch
          %333 = sbr.rel (%p331) target = $region56
        $region55: #{_gptj_mlp_call.1} parent=39 // pred_region
          %334 = dma.done %s327, 8192
        $region56: #{_gptj_mlp_call.1} parent=39 // pred_fallthru
          _
        %s335 = sand.u32 %s48, 1
        %s336 = scalar_lea.sflag [#allocation4], %s335
        %s337 = sand.u32 %s48, 1
        %s338 = smul.addr %s337, 128
        %s339 = scalar_lea.vmem [#allocation3], %s338
        %p340 = pneg %p61
        %p341 = pneg %p58
        %s342 = sand.u32 %s28, 1
        %s343 = scalar_lea.sflag [#allocation7], %s342
        %s344 = sand.u32 %s74, 1
        %s345 = smul.addr %s344, 512
        %s346 = scalar_lea.vmem [#allocation6], %s345
        %p347 = pneg %p87
        %p348 = pneg %p84
        %s349 = sand.u32 %s28, 1
        %s350 = scalar_lea.sflag [#allocation7], %s349
        %s351 = sand.u32 %s100, 1
        %s352 = smul.addr %s351, 4
        %s353 = scalar_lea.vmem [#allocation8], %s352
        %p354 = pneg %p113
        %p355 = pneg %p110
        %s356 = sand.u32 %s126, 1
        %s357 = scalar_lea.sflag [#allocation10], %s356
        %s358 = sand.u32 %s126, 1
        %s359 = smul.addr %s358, 512
        %s360 = scalar_lea.vmem [#allocation9], %s359
        %p361 = pneg %p139
        %p362 = pneg %p136
        %p363 = pneg %p160
        %p364 = pneg %p157
        %p365 = pneg %p186
        %p366 = pneg %p183
        %s367 = sand.u32 %s173, 1
        %s368 = scalar_lea.sflag [#allocation5], %s367
        %s369 = sand.u32 %s173, 1
        %s370 = smul.addr %s369, 256
        %s371 = scalar_lea.vmem [#allocation11], %s370
        %s372 = smul.u32 16, %s32
        %s373 = smul.u32 4, %s33
        %s374 = smul.u32 4, %s33
        %s375 = smul.u32 64, %s33
        %s376 = smul.u32 16, %s32
        %p377 = scmp.eq.s32.totalorder %s33, 0
        // Predicated region
        $region57: #{_gptj_mlp_call.1} parent=39 // pred_check
          %p378 = pneg %p377
        $region58: #{_gptj_mlp_call.1} parent=39 // pred_check_branch
          %380 = sbr.rel (%p378) target = $region60
        $region59: #{_gptj_mlp_call.1} parent=39 // pred_region
          %v381 = vld [vmem:[%s4] sm:$0x3]
          %v383 = vlaneseq
          %v384 = vshrl.u32 %v383, 7
          %v385 = vsub.s32 0, %v384
          %v386 = vrot.slane %v381, %v385
          %v387 = vlaneseq
          %v388 = vshrl.u32 %v387, 7
          %v389 = vsub.s32 1, %v388
          %v390 = vrot.slane %v381, %v389
          %393 = vst [vmem:[#allocation2] sm:$0xff] %v386
          %394 = vst [vmem:[#allocation2 + $0x8] sm:$0xff] %v390
          %395 = vst [vmem:[#allocation2 + $0x10] sm:$0xff] %v386
          %396 = vst [vmem:[#allocation2 + $0x18] sm:$0xff] %v390
          %397 = vst [vmem:[#allocation2 + $0x20] sm:$0xff] %v386
          %398 = vst [vmem:[#allocation2 + $0x28] sm:$0xff] %v390
          %399 = vst [vmem:[#allocation2 + $0x30] sm:$0xff] %v386
          %400 = vst [vmem:[#allocation2 + $0x38] sm:$0xff] %v390
          %401 = vst [vmem:[#allocation2 + $0x40] sm:$0xff] %v386
          %402 = vst [vmem:[#allocation2 + $0x48] sm:$0xff] %v390
          %403 = vst [vmem:[#allocation2 + $0x50] sm:$0xff] %v386
          %404 = vst [vmem:[#allocation2 + $0x58] sm:$0xff] %v390
          %405 = vst [vmem:[#allocation2 + $0x60] sm:$0xff] %v386
          %406 = vst [vmem:[#allocation2 + $0x68] sm:$0xff] %v390
          %407 = vst [vmem:[#allocation2 + $0x70] sm:$0xff] %v386
          %408 = vst [vmem:[#allocation2 + $0x78] sm:$0xff] %v390
          %409 = vst [vmem:[#allocation2 + $0x80] sm:$0xff] %v386
          %410 = vst [vmem:[#allocation2 + $0x88] sm:$0xff] %v390
          %411 = vst [vmem:[#allocation2 + $0x90] sm:$0xff] %v386
          %412 = vst [vmem:[#allocation2 + $0x98] sm:$0xff] %v390
          %413 = vst [vmem:[#allocation2 + $0xa0] sm:$0xff] %v386
          %414 = vst [vmem:[#allocation2 + $0xa8] sm:$0xff] %v390
          %415 = vst [vmem:[#allocation2 + $0xb0] sm:$0xff] %v386
          %416 = vst [vmem:[#allocation2 + $0xb8] sm:$0xff] %v390
          %417 = vst [vmem:[#allocation2 + $0xc0] sm:$0xff] %v386
          %418 = vst [vmem:[#allocation2 + $0xc8] sm:$0xff] %v390
          %419 = vst [vmem:[#allocation2 + $0xd0] sm:$0xff] %v386
          %420 = vst [vmem:[#allocation2 + $0xd8] sm:$0xff] %v390
          %421 = vst [vmem:[#allocation2 + $0xe0] sm:$0xff] %v386
          %422 = vst [vmem:[#allocation2 + $0xe8] sm:$0xff] %v390
          %423 = vst [vmem:[#allocation2 + $0xf0] sm:$0xff] %v386
          %424 = vst [vmem:[#allocation2 + $0xf8] sm:$0xff] %v390
        $region60: #{_gptj_mlp_call.1} parent=39 // pred_fallthru
          _
        %v425 = vld [vmem:[%s303] sm:$0xff]
        %v426 = vld [vmem:[%s303 + $0x8] sm:$0xff]
        %v427 = vld [vmem:[%s303 + $0x10] sm:$0xff]
        %v428 = vld [vmem:[%s303 + $0x18] sm:$0xff]
        %v429 = vld [vmem:[%s303 + $0x20] sm:$0xff]
        %v430 = vld [vmem:[%s303 + $0x28] sm:$0xff]
        %v431 = vld [vmem:[%s303 + $0x30] sm:$0xff]
        %v432 = vld [vmem:[%s303 + $0x38] sm:$0xff]
        %v433 = vld [vmem:[%s303 + $0x40] sm:$0xff]
        %v434 = vld [vmem:[%s303 + $0x48] sm:$0xff]
        %v435 = vld [vmem:[%s303 + $0x50] sm:$0xff]
        %v436 = vld [vmem:[%s303 + $0x58] sm:$0xff]
        %v437 = vld [vmem:[%s303 + $0x60] sm:$0xff]
        %v438 = vld [vmem:[%s303 + $0x68] sm:$0xff]
        %v439 = vld [vmem:[%s303 + $0x70] sm:$0xff]
        %v440 = vld [vmem:[%s303 + $0x78] sm:$0xff]
        %v441 = vld [vmem:[%s312] sm:$0xff]
        %v442 = vld [vmem:[%s312 + $0x8] sm:$0xff]
        %v443 = vld [vmem:[%s312 + $0x10] sm:$0xff]
        %v444 = vld [vmem:[%s312 + $0x18] sm:$0xff]
        %v445 = vld [vmem:[%s312 + $0x20] sm:$0xff]
        %v446 = vld [vmem:[%s312 + $0x28] sm:$0xff]
        %v447 = vld [vmem:[%s312 + $0x30] sm:$0xff]
        %v448 = vld [vmem:[%s312 + $0x38] sm:$0xff]
        %v449 = vld [vmem:[%s312 + $0x40] sm:$0xff]
        %v450 = vld [vmem:[%s312 + $0x48] sm:$0xff]
        %v451 = vld [vmem:[%s312 + $0x50] sm:$0xff]
        %v452 = vld [vmem:[%s312 + $0x58] sm:$0xff]
        %v453 = vld [vmem:[%s312 + $0x60] sm:$0xff]
        %v454 = vld [vmem:[%s312 + $0x68] sm:$0xff]
        %v455 = vld [vmem:[%s312 + $0x70] sm:$0xff]
        %v456 = vld [vmem:[%s312 + $0x78] sm:$0xff]
        %v457 = vld [vmem:[%s312 + $0x80] sm:$0xff]
        %v458 = vld [vmem:[%s312 + $0x88] sm:$0xff]
        %v459 = vld [vmem:[%s312 + $0x90] sm:$0xff]
        %v460 = vld [vmem:[%s312 + $0x98] sm:$0xff]
        %v461 = vld [vmem:[%s312 + $0xa0] sm:$0xff]
        %v462 = vld [vmem:[%s312 + $0xa8] sm:$0xff]
        %v463 = vld [vmem:[%s312 + $0xb0] sm:$0xff]
        %v464 = vld [vmem:[%s312 + $0xb8] sm:$0xff]
        %v465 = vld [vmem:[%s312 + $0xc0] sm:$0xff]
        %v466 = vld [vmem:[%s312 + $0xc8] sm:$0xff]
        %v467 = vld [vmem:[%s312 + $0xd0] sm:$0xff]
        %v468 = vld [vmem:[%s312 + $0xd8] sm:$0xff]
        %v469 = vld [vmem:[%s312 + $0xe0] sm:$0xff]
        %v470 = vld [vmem:[%s312 + $0xe8] sm:$0xff]
        %v471 = vld [vmem:[%s312 + $0xf0] sm:$0xff]
        %v472 = vld [vmem:[%s312 + $0xf8] sm:$0xff]
        %v473 = vld [vmem:[%s312 + $0x100] sm:$0xff]
        %v474 = vld [vmem:[%s312 + $0x108] sm:$0xff]
        %v475 = vld [vmem:[%s312 + $0x110] sm:$0xff]
        %v476 = vld [vmem:[%s312 + $0x118] sm:$0xff]
        %v477 = vld [vmem:[%s312 + $0x120] sm:$0xff]
        %v478 = vld [vmem:[%s312 + $0x128] sm:$0xff]
        %v479 = vld [vmem:[%s312 + $0x130] sm:$0xff]
        %v480 = vld [vmem:[%s312 + $0x138] sm:$0xff]
        %v481 = vld [vmem:[%s312 + $0x140] sm:$0xff]
        %v482 = vld [vmem:[%s312 + $0x148] sm:$0xff]
        %v483 = vld [vmem:[%s312 + $0x150] sm:$0xff]
        %v484 = vld [vmem:[%s312 + $0x158] sm:$0xff]
        %v485 = vld [vmem:[%s312 + $0x160] sm:$0xff]
        %v486 = vld [vmem:[%s312 + $0x168] sm:$0xff]
        %v487 = vld [vmem:[%s312 + $0x170] sm:$0xff]
        %v488 = vld [vmem:[%s312 + $0x178] sm:$0xff]
        %v489 = vld [vmem:[%s312 + $0x180] sm:$0xff]
        %v490 = vld [vmem:[%s312 + $0x188] sm:$0xff]
        %v491 = vld [vmem:[%s312 + $0x190] sm:$0xff]
        %v492 = vld [vmem:[%s312 + $0x198] sm:$0xff]
        %v493 = vld [vmem:[%s312 + $0x1a0] sm:$0xff]
        %v494 = vld [vmem:[%s312 + $0x1a8] sm:$0xff]
        %v495 = vld [vmem:[%s312 + $0x1b0] sm:$0xff]
        %v496 = vld [vmem:[%s312 + $0x1b8] sm:$0xff]
        %v497 = vld [vmem:[%s312 + $0x1c0] sm:$0xff]
        %v498 = vld [vmem:[%s312 + $0x1c8] sm:$0xff]
        %v499 = vld [vmem:[%s312 + $0x1d0] sm:$0xff]
        %v500 = vld [vmem:[%s312 + $0x1d8] sm:$0xff]
        %v501 = vld [vmem:[%s312 + $0x1e0] sm:$0xff]
        %v502 = vld [vmem:[%s312 + $0x1e8] sm:$0xff]
        %v503 = vld [vmem:[%s312 + $0x1f0] sm:$0xff]
        %v504 = vld [vmem:[%s312 + $0x1f8] sm:$0xff]
        %v505 = vld [vmem:[%s321] sm:$0xf]
        %v507 = vlaneseq
        %v508 = vshrl.u32 %v507, 7
        %v509 = vsub.s32 0, %v508
        %v510 = vrot.slane %v505, %v509
        %v511 = vlaneseq
        %v512 = vshrl.u32 %v511, 7
        %v513 = vsub.s32 1, %v512
        %v514 = vrot.slane %v505, %v513
        %v515 = vlaneseq
        %v516 = vshrl.u32 %v515, 7
        %v517 = vsub.s32 2, %v516
        %v518 = vrot.slane %v505, %v517
        %v519 = vlaneseq
        %v520 = vshrl.u32 %v519, 7
        %v521 = vsub.s32 3, %v520
        %v522 = vrot.slane %v505, %v521
        %v543 = vunpack.c.l.b16 %v425
        %v544 = vunpack.c.h.b16 %v425
        %v545 = vunpack.c.l.b16 %v426
        %v546 = vunpack.c.h.b16 %v426
        %v547 = vunpack.c.l.b16 %v427
        %v548 = vunpack.c.h.b16 %v427
        %v549 = vunpack.c.l.b16 %v428
        %v550 = vunpack.c.h.b16 %v428
        %v551 = vunpack.c.l.b16 %v429
        %v552 = vunpack.c.h.b16 %v429
        %v553 = vunpack.c.l.b16 %v430
        %v554 = vunpack.c.h.b16 %v430
        %v555 = vunpack.c.l.b16 %v431
        %v556 = vunpack.c.h.b16 %v431
        %v557 = vunpack.c.l.b16 %v432
        %v558 = vunpack.c.h.b16 %v432
        %v559 = vunpack.c.l.b16 %v433
        %v560 = vunpack.c.h.b16 %v433
        %v561 = vunpack.c.l.b16 %v434
        %v562 = vunpack.c.h.b16 %v434
        %v563 = vunpack.c.l.b16 %v435
        %v564 = vunpack.c.h.b16 %v435
        %v565 = vunpack.c.l.b16 %v436
        %v566 = vunpack.c.h.b16 %v436
        %v567 = vunpack.c.l.b16 %v437
        %v568 = vunpack.c.h.b16 %v437
        %v569 = vunpack.c.l.b16 %v438
        %v570 = vunpack.c.h.b16 %v438
        %v571 = vunpack.c.l.b16 %v439
        %v572 = vunpack.c.h.b16 %v439
        %v573 = vunpack.c.l.b16 %v440
        %v574 = vunpack.c.h.b16 %v440
        %v575 = vpack.c.b16 %v545, %v543
        %v576 = vpack.c.b16 %v546, %v544
        %v577 = vpack.c.b16 %v549, %v547
        %v578 = vpack.c.b16 %v550, %v548
        %v579 = vpack.c.b16 %v553, %v551
        %v580 = vpack.c.b16 %v554, %v552
        %v581 = vpack.c.b16 %v557, %v555
        %v582 = vpack.c.b16 %v558, %v556
        %v583 = vpack.c.b16 %v561, %v559
        %v584 = vpack.c.b16 %v562, %v560
        %v585 = vpack.c.b16 %v565, %v563
        %v586 = vpack.c.b16 %v566, %v564
        %v587 = vpack.c.b16 %v569, %v567
        %v588 = vpack.c.b16 %v570, %v568
        %v589 = vpack.c.b16 %v573, %v571
        %v590 = vpack.c.b16 %v574, %v572
        %v671 = vunpack.c.l.b16 %v441
        %v672 = vunpack.c.h.b16 %v441
        %v673 = vunpack.c.l.b16 %v442
        %v674 = vunpack.c.h.b16 %v442
        %v675 = vunpack.c.l.b16 %v443
        %v676 = vunpack.c.h.b16 %v443
        %v677 = vunpack.c.l.b16 %v444
        %v678 = vunpack.c.h.b16 %v444
        %v679 = vunpack.c.l.b16 %v445
        %v680 = vunpack.c.h.b16 %v445
        %v681 = vunpack.c.l.b16 %v446
        %v682 = vunpack.c.h.b16 %v446
        %v683 = vunpack.c.l.b16 %v447
        %v684 = vunpack.c.h.b16 %v447
        %v685 = vunpack.c.l.b16 %v448
        %v686 = vunpack.c.h.b16 %v448
        %v687 = vunpack.c.l.b16 %v449
        %v688 = vunpack.c.h.b16 %v449
        %v689 = vunpack.c.l.b16 %v450
        %v690 = vunpack.c.h.b16 %v450
        %v691 = vunpack.c.l.b16 %v451
        %v692 = vunpack.c.h.b16 %v451
        %v693 = vunpack.c.l.b16 %v452
        %v694 = vunpack.c.h.b16 %v452
        %v695 = vunpack.c.l.b16 %v453
        %v696 = vunpack.c.h.b16 %v453
        %v697 = vunpack.c.l.b16 %v454
        %v698 = vunpack.c.h.b16 %v454
        %v699 = vunpack.c.l.b16 %v455
        %v700 = vunpack.c.h.b16 %v455
        %v701 = vunpack.c.l.b16 %v456
        %v702 = vunpack.c.h.b16 %v456
        %v703 = vunpack.c.l.b16 %v457
        %v704 = vunpack.c.h.b16 %v457
        %v705 = vunpack.c.l.b16 %v458
        %v706 = vunpack.c.h.b16 %v458
        %v707 = vunpack.c.l.b16 %v459
        %v708 = vunpack.c.h.b16 %v459
        %v709 = vunpack.c.l.b16 %v460
        %v710 = vunpack.c.h.b16 %v460
        %v711 = vunpack.c.l.b16 %v461
        %v712 = vunpack.c.h.b16 %v461
        %v713 = vunpack.c.l.b16 %v462
        %v714 = vunpack.c.h.b16 %v462
        %v715 = vunpack.c.l.b16 %v463
        %v716 = vunpack.c.h.b16 %v463
        %v717 = vunpack.c.l.b16 %v464
        %v718 = vunpack.c.h.b16 %v464
        %v719 = vunpack.c.l.b16 %v465
        %v720 = vunpack.c.h.b16 %v465
        %v721 = vunpack.c.l.b16 %v466
        %v722 = vunpack.c.h.b16 %v466
        %v723 = vunpack.c.l.b16 %v467
        %v724 = vunpack.c.h.b16 %v467
        %v725 = vunpack.c.l.b16 %v468
        %v726 = vunpack.c.h.b16 %v468
        %v727 = vunpack.c.l.b16 %v469
        %v728 = vunpack.c.h.b16 %v469
        %v729 = vunpack.c.l.b16 %v470
        %v730 = vunpack.c.h.b16 %v470
        %v731 = vunpack.c.l.b16 %v471
        %v732 = vunpack.c.h.b16 %v471
        %v733 = vunpack.c.l.b16 %v472
        %v734 = vunpack.c.h.b16 %v472
        %v735 = vunpack.c.l.b16 %v473
        %v736 = vunpack.c.h.b16 %v473
        %v737 = vunpack.c.l.b16 %v474
        %v738 = vunpack.c.h.b16 %v474
        %v739 = vunpack.c.l.b16 %v475
        %v740 = vunpack.c.h.b16 %v475
        %v741 = vunpack.c.l.b16 %v476
        %v742 = vunpack.c.h.b16 %v476
        %v743 = vunpack.c.l.b16 %v477
        %v744 = vunpack.c.h.b16 %v477
        %v745 = vunpack.c.l.b16 %v478
        %v746 = vunpack.c.h.b16 %v478
        %v747 = vunpack.c.l.b16 %v479
        %v748 = vunpack.c.h.b16 %v479
        %v749 = vunpack.c.l.b16 %v480
        %v750 = vunpack.c.h.b16 %v480
        %v751 = vunpack.c.l.b16 %v481
        %v752 = vunpack.c.h.b16 %v481
        %v753 = vunpack.c.l.b16 %v482
        %v754 = vunpack.c.h.b16 %v482
        %v755 = vunpack.c.l.b16 %v483
        %v756 = vunpack.c.h.b16 %v483
        %v757 = vunpack.c.l.b16 %v484
        %v758 = vunpack.c.h.b16 %v484
        %v759 = vunpack.c.l.b16 %v485
        %v760 = vunpack.c.h.b16 %v485
        %v761 = vunpack.c.l.b16 %v486
        %v762 = vunpack.c.h.b16 %v486
        %v763 = vunpack.c.l.b16 %v487
        %v764 = vunpack.c.h.b16 %v487
        %v765 = vunpack.c.l.b16 %v488
        %v766 = vunpack.c.h.b16 %v488
        %v767 = vunpack.c.l.b16 %v489
        %v768 = vunpack.c.h.b16 %v489
        %v769 = vunpack.c.l.b16 %v490
        %v770 = vunpack.c.h.b16 %v490
        %v771 = vunpack.c.l.b16 %v491
        %v772 = vunpack.c.h.b16 %v491
        %v773 = vunpack.c.l.b16 %v492
        %v774 = vunpack.c.h.b16 %v492
        %v775 = vunpack.c.l.b16 %v493
        %v776 = vunpack.c.h.b16 %v493
        %v777 = vunpack.c.l.b16 %v494
        %v778 = vunpack.c.h.b16 %v494
        %v779 = vunpack.c.l.b16 %v495
        %v780 = vunpack.c.h.b16 %v495
        %v781 = vunpack.c.l.b16 %v496
        %v782 = vunpack.c.h.b16 %v496
        %v783 = vunpack.c.l.b16 %v497
        %v784 = vunpack.c.h.b16 %v497
        %v785 = vunpack.c.l.b16 %v498
        %v786 = vunpack.c.h.b16 %v498
        %v787 = vunpack.c.l.b16 %v499
        %v788 = vunpack.c.h.b16 %v499
        %v789 = vunpack.c.l.b16 %v500
        %v790 = vunpack.c.h.b16 %v500
        %v791 = vunpack.c.l.b16 %v501
        %v792 = vunpack.c.h.b16 %v501
        %v793 = vunpack.c.l.b16 %v502
        %v794 = vunpack.c.h.b16 %v502
        %v795 = vunpack.c.l.b16 %v503
        %v796 = vunpack.c.h.b16 %v503
        %v797 = vunpack.c.l.b16 %v504
        %v798 = vunpack.c.h.b16 %v504
        %v799 = vpack.c.b16 %v675, %v671
        %v800 = vpack.c.b16 %v676, %v672
        %v801 = vpack.c.b16 %v677, %v673
        %v802 = vpack.c.b16 %v678, %v674
        %v803 = vpack.c.b16 %v683, %v679
        %v804 = vpack.c.b16 %v684, %v680
        %v805 = vpack.c.b16 %v685, %v681
        %v806 = vpack.c.b16 %v686, %v682
        %v807 = vpack.c.b16 %v691, %v687
        %v808 = vpack.c.b16 %v692, %v688
        %v809 = vpack.c.b16 %v693, %v689
        %v810 = vpack.c.b16 %v694, %v690
        %v811 = vpack.c.b16 %v699, %v695
        %v812 = vpack.c.b16 %v700, %v696
        %v813 = vpack.c.b16 %v701, %v697
        %v814 = vpack.c.b16 %v702, %v698
        %v815 = vpack.c.b16 %v707, %v703
        %v816 = vpack.c.b16 %v708, %v704
        %v817 = vpack.c.b16 %v709, %v705
        %v818 = vpack.c.b16 %v710, %v706
        %v819 = vpack.c.b16 %v715, %v711
        %v820 = vpack.c.b16 %v716, %v712
        %v821 = vpack.c.b16 %v717, %v713
        %v822 = vpack.c.b16 %v718, %v714
        %v823 = vpack.c.b16 %v723, %v719
        %v824 = vpack.c.b16 %v724, %v720
        %v825 = vpack.c.b16 %v725, %v721
        %v826 = vpack.c.b16 %v726, %v722
        %v827 = vpack.c.b16 %v731, %v727
        %v828 = vpack.c.b16 %v732, %v728
        %v829 = vpack.c.b16 %v733, %v729
        %v830 = vpack.c.b16 %v734, %v730
        %v831 = vpack.c.b16 %v739, %v735
        %v832 = vpack.c.b16 %v740, %v736
        %v833 = vpack.c.b16 %v741, %v737
        %v834 = vpack.c.b16 %v742, %v738
        %v835 = vpack.c.b16 %v747, %v743
        %v836 = vpack.c.b16 %v748, %v744
        %v837 = vpack.c.b16 %v749, %v745
        %v838 = vpack.c.b16 %v750, %v746
        %v839 = vpack.c.b16 %v755, %v751
        %v840 = vpack.c.b16 %v756, %v752
        %v841 = vpack.c.b16 %v757, %v753
        %v842 = vpack.c.b16 %v758, %v754
        %v843 = vpack.c.b16 %v763, %v759
        %v844 = vpack.c.b16 %v764, %v760
        %v845 = vpack.c.b16 %v765, %v761
        %v846 = vpack.c.b16 %v766, %v762
        %v847 = vpack.c.b16 %v771, %v767
        %v848 = vpack.c.b16 %v772, %v768
        %v849 = vpack.c.b16 %v773, %v769
        %v850 = vpack.c.b16 %v774, %v770
        %v851 = vpack.c.b16 %v779, %v775
        %v852 = vpack.c.b16 %v780, %v776
        %v853 = vpack.c.b16 %v781, %v777
        %v854 = vpack.c.b16 %v782, %v778
        %v855 = vpack.c.b16 %v787, %v783
        %v856 = vpack.c.b16 %v788, %v784
        %v857 = vpack.c.b16 %v789, %v785
        %v858 = vpack.c.b16 %v790, %v786
        %v859 = vpack.c.b16 %v795, %v791
        %v860 = vpack.c.b16 %v796, %v792
        %v861 = vpack.c.b16 %v797, %v793
        %v862 = vpack.c.b16 %v798, %v794
        %927 = vmatprep.subr.bf16.mxu0 %v800
        %928 = vmatpush1.bf16.msra.mxu0 %v799
        %929 = vmatprep.subr.bf16.mxu0 %v804
        %930 = vmatpush1.bf16.msra.mxu0 %v803
        %931 = vmatprep.subr.bf16.mxu0 %v808
        %932 = vmatpush1.bf16.msra.mxu0 %v807
        %933 = vmatprep.subr.bf16.mxu0 %v812
        %934 = vmatpush1.bf16.msra.mxu0 %v811
        %935 = vmatprep.subr.bf16.mxu0 %v816
        %936 = vmatpush1.bf16.msra.mxu0 %v815
        %937 = vmatprep.subr.bf16.mxu0 %v820
        %938 = vmatpush1.bf16.msra.mxu0 %v819
        %939 = vmatprep.subr.bf16.mxu0 %v824
        %940 = vmatpush1.bf16.msra.mxu0 %v823
        %941 = vmatprep.subr.bf16.mxu0 %v828
        %942 = vmatpush1.bf16.msra.mxu0 %v827
        %943 = vmatprep.subr.bf16.mxu0 %v832
        %944 = vmatpush1.bf16.msra.mxu0 %v831
        %945 = vmatprep.subr.bf16.mxu0 %v836
        %946 = vmatpush1.bf16.msra.mxu0 %v835
        %947 = vmatprep.subr.bf16.mxu0 %v840
        %948 = vmatpush1.bf16.msra.mxu0 %v839
        %949 = vmatprep.subr.bf16.mxu0 %v844
        %950 = vmatpush1.bf16.msra.mxu0 %v843
        %951 = vmatprep.subr.bf16.mxu0 %v848
        %952 = vmatpush1.bf16.msra.mxu0 %v847
        %953 = vmatprep.subr.bf16.mxu0 %v852
        %954 = vmatpush1.bf16.msra.mxu0 %v851
        %955 = vmatprep.subr.bf16.mxu0 %v856
        %956 = vmatpush1.bf16.msra.mxu0 %v855
        %957 = vmatprep.subr.bf16.mxu0 %v860
        %958 = vmatpush1.bf16.msra.mxu0 %v859
        %959 = vmatprep.mubr.bf16.mxu0 %v576
        %960 = vmatmul.mubr.bf16.gmra.mrb[0].mxu0 %v575
        %v961 = vpop.f32.mrb[0].mxu0
        %v962 = vadd.f32 %v510, %v961
        %v963 = vpop.f32.mrb[0].mxu0
        %v964 = vadd.f32 %v514, %v963
        %v965 = vpop.f32.mrb[0].mxu0
        %v966 = vadd.f32 %v510, %v965
        %v967 = vpop.f32.mrb[0].mxu0
        %v968 = vadd.f32 %v514, %v967
        %969 = vmatprep.mubr.bf16.mxu0 %v578
        %970 = vmatmul.mubr.bf16.gmra.mrb[0].mxu0 %v577
        %v971 = vpop.f32.mrb[0].mxu0
        %v972 = vadd.f32 %v510, %v971
        %v973 = vpop.f32.mrb[0].mxu0
        %v974 = vadd.f32 %v514, %v973
        %v975 = vpop.f32.mrb[0].mxu0
        %v976 = vadd.f32 %v510, %v975
        %v977 = vpop.f32.mrb[0].mxu0
        %v978 = vadd.f32 %v514, %v977
        %979 = vmatprep.mubr.bf16.mxu0 %v580
        %980 = vmatmul.mubr.bf16.gmra.mrb[0].mxu0 %v579
        %v981 = vpop.f32.mrb[0].mxu0
        %v982 = vadd.f32 %v510, %v981
        %v983 = vpop.f32.mrb[0].mxu0
        %v984 = vadd.f32 %v514, %v983
        %v985 = vpop.f32.mrb[0].mxu0
        %v986 = vadd.f32 %v510, %v985
        %v987 = vpop.f32.mrb[0].mxu0
        %v988 = vadd.f32 %v514, %v987
        %989 = vmatprep.mubr.bf16.mxu0 %v582
        %990 = vmatmul.mubr.bf16.gmra.mrb[0].mxu0 %v581
        %v991 = vpop.f32.mrb[0].mxu0
        %v992 = vadd.f32 %v510, %v991
        %v993 = vpop.f32.mrb[0].mxu0
        %v994 = vadd.f32 %v514, %v993
        %v995 = vpop.f32.mrb[0].mxu0
        %v996 = vadd.f32 %v510, %v995
        %v997 = vpop.f32.mrb[0].mxu0
        %v998 = vadd.f32 %v514, %v997
        %999 = vmatprep.mubr.bf16.mxu0 %v584
        %1000 = vmatmul.mubr.bf16.gmra.mrb[0].mxu0 %v583
        %v1001 = vpop.f32.mrb[0].mxu0
        %v1002 = vadd.f32 %v510, %v1001
        %v1003 = vpop.f32.mrb[0].mxu0
        %v1004 = vadd.f32 %v514, %v1003
        %v1005 = vpop.f32.mrb[0].mxu0
        %v1006 = vadd.f32 %v510, %v1005
        %v1007 = vpop.f32.mrb[0].mxu0
        %v1008 = vadd.f32 %v514, %v1007
        %1009 = vmatprep.mubr.bf16.mxu0 %v586
        %1010 = vmatmul.mubr.bf16.gmra.mrb[0].mxu0 %v585
        %v1011 = vpop.f32.mrb[0].mxu0
        %v1012 = vadd.f32 %v510, %v1011
        %v1013 = vpop.f32.mrb[0].mxu0
        %v1014 = vadd.f32 %v514, %v1013
        %v1015 = vpop.f32.mrb[0].mxu0
        %v1016 = vadd.f32 %v510, %v1015
        %v1017 = vpop.f32.mrb[0].mxu0
        %v1018 = vadd.f32 %v514, %v1017
        %1019 = vmatprep.mubr.bf16.mxu0 %v588
        %1020 = vmatmul.mubr.bf16.gmra.mrb[0].mxu0 %v587
        %v1021 = vpop.f32.mrb[0].mxu0
        %v1022 = vadd.f32 %v510, %v1021
        %v1023 = vpop.f32.mrb[0].mxu0
        %v1024 = vadd.f32 %v514, %v1023
        %v1025 = vpop.f32.mrb[0].mxu0
        %v1026 = vadd.f32 %v510, %v1025
        %v1027 = vpop.f32.mrb[0].mxu0
        %v1028 = vadd.f32 %v514, %v1027
        %1029 = vmatprep.mubr.bf16.mxu0 %v590
        %1030 = vmatmul.mubr.bf16.gmra.mrb[0].mxu0 %v589
        %v1031 = vpop.f32.mrb[0].mxu0
        %v1032 = vadd.f32 %v510, %v1031
        %v1033 = vpop.f32.mrb[0].mxu0
        %v1034 = vadd.f32 %v514, %v1033
        %v1035 = vpop.f32.mrb[0].mxu0
        %v1036 = vadd.f32 %v510, %v1035
        %v1037 = vpop.f32.mrb[0].mxu0
        %v1038 = vadd.f32 %v514, %v1037
        %1039 = vdwg.mxu0
        %1040 = vmatprep.subr.bf16.mxu0 %v802
        %1041 = vmatpush1.bf16.msra.mxu0 %v801
        %1042 = vmatprep.subr.bf16.mxu0 %v806
        %1043 = vmatpush1.bf16.msra.mxu0 %v805
        %1044 = vmatprep.subr.bf16.mxu0 %v810
        %1045 = vmatpush1.bf16.msra.mxu0 %v809
        %1046 = vmatprep.subr.bf16.mxu0 %v814
        %1047 = vmatpush1.bf16.msra.mxu0 %v813
        %1048 = vmatprep.subr.bf16.mxu0 %v818
        %1049 = vmatpush1.bf16.msra.mxu0 %v817
        %1050 = vmatprep.subr.bf16.mxu0 %v822
        %1051 = vmatpush1.bf16.msra.mxu0 %v821
        %1052 = vmatprep.subr.bf16.mxu0 %v826
        %1053 = vmatpush1.bf16.msra.mxu0 %v825
        %1054 = vmatprep.subr.bf16.mxu0 %v830
        %1055 = vmatpush1.bf16.msra.mxu0 %v829
        %1056 = vmatprep.subr.bf16.mxu0 %v834
        %1057 = vmatpush1.bf16.msra.mxu0 %v833
        %1058 = vmatprep.subr.bf16.mxu0 %v838
        %1059 = vmatpush1.bf16.msra.mxu0 %v837
        %1060 = vmatprep.subr.bf16.mxu0 %v842
        %1061 = vmatpush1.bf16.msra.mxu0 %v841
        %1062 = vmatprep.subr.bf16.mxu0 %v846
        %1063 = vmatpush1.bf16.msra.mxu0 %v845
        %1064 = vmatprep.subr.bf16.mxu0 %v850
        %1065 = vmatpush1.bf16.msra.mxu0 %v849
        %1066 = vmatprep.subr.bf16.mxu0 %v854
        %1067 = vmatpush1.bf16.msra.mxu0 %v853
        %1068 = vmatprep.subr.bf16.mxu0 %v858
        %1069 = vmatpush1.bf16.msra.mxu0 %v857
        %1070 = vmatprep.subr.bf16.mxu0 %v862
        %1071 = vmatpush1.bf16.msra.mxu0 %v861
        %1072 = vmatprep.mubr.bf16.mxu0 %v576
        %1073 = vmatmul.mubr.bf16.gmra.mrb[0].mxu0 %v575
        %v1074 = vpop.f32.mrb[0].mxu0
        %v1075 = vadd.f32 %v518, %v1074
        %v1076 = vpop.f32.mrb[0].mxu0
        %v1077 = vadd.f32 %v522, %v1076
        %v1078 = vpop.f32.mrb[0].mxu0
        %v1079 = vadd.f32 %v518, %v1078
        %v1080 = vpop.f32.mrb[0].mxu0
        %v1081 = vadd.f32 %v522, %v1080
        %1082 = vmatprep.mubr.bf16.mxu0 %v578
        %1083 = vmatmul.mubr.bf16.gmra.mrb[0].mxu0 %v577
        %v1084 = vpop.f32.mrb[0].mxu0
        %v1085 = vadd.f32 %v518, %v1084
        %v1086 = vpop.f32.mrb[0].mxu0
        %v1087 = vadd.f32 %v522, %v1086
        %v1088 = vpop.f32.mrb[0].mxu0
        %v1089 = vadd.f32 %v518, %v1088
        %v1090 = vpop.f32.mrb[0].mxu0
        %v1091 = vadd.f32 %v522, %v1090
        %1092 = vmatprep.mubr.bf16.mxu0 %v580
        %1093 = vmatmul.mubr.bf16.gmra.mrb[0].mxu0 %v579
        %v1094 = vpop.f32.mrb[0].mxu0
        %v1095 = vadd.f32 %v518, %v1094
        %v1096 = vpop.f32.mrb[0].mxu0
        %v1097 = vadd.f32 %v522, %v1096
        %v1098 = vpop.f32.mrb[0].mxu0
        %v1099 = vadd.f32 %v518, %v1098
        %v1100 = vpop.f32.mrb[0].mxu0
        %v1101 = vadd.f32 %v522, %v1100
        %1102 = vmatprep.mubr.bf16.mxu0 %v582
        %1103 = vmatmul.mubr.bf16.gmra.mrb[0].mxu0 %v581
        %v1104 = vpop.f32.mrb[0].mxu0
        %v1105 = vadd.f32 %v518, %v1104
        %v1106 = vpop.f32.mrb[0].mxu0
        %v1107 = vadd.f32 %v522, %v1106
        %v1108 = vpop.f32.mrb[0].mxu0
        %v1109 = vadd.f32 %v518, %v1108
        %v1110 = vpop.f32.mrb[0].mxu0
        %v1111 = vadd.f32 %v522, %v1110
        %1112 = vmatprep.mubr.bf16.mxu0 %v584
        %1113 = vmatmul.mubr.bf16.gmra.mrb[0].mxu0 %v583
        %v1114 = vpop.f32.mrb[0].mxu0
        %v1115 = vadd.f32 %v518, %v1114
        %v1116 = vpop.f32.mrb[0].mxu0
        %v1117 = vadd.f32 %v522, %v1116
        %v1118 = vpop.f32.mrb[0].mxu0
        %v1119 = vadd.f32 %v518, %v1118
        %v1120 = vpop.f32.mrb[0].mxu0
        %v1121 = vadd.f32 %v522, %v1120
        %1122 = vmatprep.mubr.bf16.mxu0 %v586
        %1123 = vmatmul.mubr.bf16.gmra.mrb[0].mxu0 %v585
        %v1124 = vpop.f32.mrb[0].mxu0
        %v1125 = vadd.f32 %v518, %v1124
        %v1126 = vpop.f32.mrb[0].mxu0
        %v1127 = vadd.f32 %v522, %v1126
        %v1128 = vpop.f32.mrb[0].mxu0
        %v1129 = vadd.f32 %v518, %v1128
        %v1130 = vpop.f32.mrb[0].mxu0
        %v1131 = vadd.f32 %v522, %v1130
        %1132 = vmatprep.mubr.bf16.mxu0 %v588
        %1133 = vmatmul.mubr.bf16.gmra.mrb[0].mxu0 %v587
        %v1134 = vpop.f32.mrb[0].mxu0
        %v1135 = vadd.f32 %v518, %v1134
        %v1136 = vpop.f32.mrb[0].mxu0
        %v1137 = vadd.f32 %v522, %v1136
        %v1138 = vpop.f32.mrb[0].mxu0
        %v1139 = vadd.f32 %v518, %v1138
        %v1140 = vpop.f32.mrb[0].mxu0
        %v1141 = vadd.f32 %v522, %v1140
        %1142 = vmatprep.mubr.bf16.mxu0 %v590
        %1143 = vmatmul.mubr.bf16.gmra.mrb[0].mxu0 %v589
        %v1144 = vpop.f32.mrb[0].mxu0
        %v1145 = vadd.f32 %v518, %v1144
        %v1146 = vpop.f32.mrb[0].mxu0
        %v1147 = vadd.f32 %v522, %v1146
        %v1148 = vpop.f32.mrb[0].mxu0
        %v1149 = vadd.f32 %v518, %v1148
        %v1150 = vpop.f32.mrb[0].mxu0
        %v1151 = vadd.f32 %v522, %v1150
        %1152 = vdwg.mxu0
        %v1153 = vmul.f32 %v962, 0.5
        %v1154 = vmul.f32 %v964, 0.5
        %v1155 = vmul.f32 %v1075, 0.5
        %v1156 = vmul.f32 %v1077, 0.5
        %v1157 = vmul.f32 %v966, 0.5
        %v1158 = vmul.f32 %v968, 0.5
        %v1159 = vmul.f32 %v1079, 0.5
        %v1160 = vmul.f32 %v1081, 0.5
        %v1161 = vmul.f32 %v972, 0.5
        %v1162 = vmul.f32 %v974, 0.5
        %v1163 = vmul.f32 %v1085, 0.5
        %v1164 = vmul.f32 %v1087, 0.5
        %v1165 = vmul.f32 %v976, 0.5
        %v1166 = vmul.f32 %v978, 0.5
        %v1167 = vmul.f32 %v1089, 0.5
        %v1168 = vmul.f32 %v1091, 0.5
        %v1169 = vmul.f32 %v982, 0.5
        %v1170 = vmul.f32 %v984, 0.5
        %v1171 = vmul.f32 %v1095, 0.5
        %v1172 = vmul.f32 %v1097, 0.5
        %v1173 = vmul.f32 %v986, 0.5
        %v1174 = vmul.f32 %v988, 0.5
        %v1175 = vmul.f32 %v1099, 0.5
        %v1176 = vmul.f32 %v1101, 0.5
        %v1177 = vmul.f32 %v992, 0.5
        %v1178 = vmul.f32 %v994, 0.5
        %v1179 = vmul.f32 %v1105, 0.5
        %v1180 = vmul.f32 %v1107, 0.5
        %v1181 = vmul.f32 %v996, 0.5
        %v1182 = vmul.f32 %v998, 0.5
        %v1183 = vmul.f32 %v1109, 0.5
        %v1184 = vmul.f32 %v1111, 0.5
        %v1185 = vmul.f32 %v1002, 0.5
        %v1186 = vmul.f32 %v1004, 0.5
        %v1187 = vmul.f32 %v1115, 0.5
        %v1188 = vmul.f32 %v1117, 0.5
        %v1189 = vmul.f32 %v1006, 0.5
        %v1190 = vmul.f32 %v1008, 0.5
        %v1191 = vmul.f32 %v1119, 0.5
        %v1192 = vmul.f32 %v1121, 0.5
        %v1193 = vmul.f32 %v1012, 0.5
        %v1194 = vmul.f32 %v1014, 0.5
        %v1195 = vmul.f32 %v1125, 0.5
        %v1196 = vmul.f32 %v1127, 0.5
        %v1197 = vmul.f32 %v1016, 0.5
        %v1198 = vmul.f32 %v1018, 0.5
        %v1199 = vmul.f32 %v1129, 0.5
        %v1200 = vmul.f32 %v1131, 0.5
        %v1201 = vmul.f32 %v1022, 0.5
        %v1202 = vmul.f32 %v1024, 0.5
        %v1203 = vmul.f32 %v1135, 0.5
        %v1204 = vmul.f32 %v1137, 0.5
        %v1205 = vmul.f32 %v1026, 0.5
        %v1206 = vmul.f32 %v1028, 0.5
        %v1207 = vmul.f32 %v1139, 0.5
        %v1208 = vmul.f32 %v1141, 0.5
        %v1209 = vmul.f32 %v1032, 0.5
        %v1210 = vmul.f32 %v1034, 0.5
        %v1211 = vmul.f32 %v1145, 0.5
        %v1212 = vmul.f32 %v1147, 0.5
        %v1213 = vmul.f32 %v1036, 0.5
        %v1214 = vmul.f32 %v1038, 0.5
        %v1215 = vmul.f32 %v1149, 0.5
        %v1216 = vmul.f32 %v1151, 0.5
        %v1217 = vmul.f32 %v962, 0.044715
        %v1218 = vmul.f32 %v964, 0.044715
        %v1219 = vmul.f32 %v1075, 0.044715
        %v1220 = vmul.f32 %v1077, 0.044715
        %v1221 = vmul.f32 %v966, 0.044715
        %v1222 = vmul.f32 %v968, 0.044715
        %v1223 = vmul.f32 %v1079, 0.044715
        %v1224 = vmul.f32 %v1081, 0.044715
        %v1225 = vmul.f32 %v972, 0.044715
        %v1226 = vmul.f32 %v974, 0.044715
        %v1227 = vmul.f32 %v1085, 0.044715
        %v1228 = vmul.f32 %v1087, 0.044715
        %v1229 = vmul.f32 %v976, 0.044715
        %v1230 = vmul.f32 %v978, 0.044715
        %v1231 = vmul.f32 %v1089, 0.044715
        %v1232 = vmul.f32 %v1091, 0.044715
        %v1233 = vmul.f32 %v982, 0.044715
        %v1234 = vmul.f32 %v984, 0.044715
        %v1235 = vmul.f32 %v1095, 0.044715
        %v1236 = vmul.f32 %v1097, 0.044715
        %v1237 = vmul.f32 %v986, 0.044715
        %v1238 = vmul.f32 %v988, 0.044715
        %v1239 = vmul.f32 %v1099, 0.044715
        %v1240 = vmul.f32 %v1101, 0.044715
        %v1241 = vmul.f32 %v992, 0.044715
        %v1242 = vmul.f32 %v994, 0.044715
        %v1243 = vmul.f32 %v1105, 0.044715
        %v1244 = vmul.f32 %v1107, 0.044715
        %v1245 = vmul.f32 %v996, 0.044715
        %v1246 = vmul.f32 %v998, 0.044715
        %v1247 = vmul.f32 %v1109, 0.044715
        %v1248 = vmul.f32 %v1111, 0.044715
        %v1249 = vmul.f32 %v1002, 0.044715
        %v1250 = vmul.f32 %v1004, 0.044715
        %v1251 = vmul.f32 %v1115, 0.044715
        %v1252 = vmul.f32 %v1117, 0.044715
        %v1253 = vmul.f32 %v1006, 0.044715
        %v1254 = vmul.f32 %v1008, 0.044715
        %v1255 = vmul.f32 %v1119, 0.044715
        %v1256 = vmul.f32 %v1121, 0.044715
        %v1257 = vmul.f32 %v1012, 0.044715
        %v1258 = vmul.f32 %v1014, 0.044715
        %v1259 = vmul.f32 %v1125, 0.044715
        %v1260 = vmul.f32 %v1127, 0.044715
        %v1261 = vmul.f32 %v1016, 0.044715
        %v1262 = vmul.f32 %v1018, 0.044715
        %v1263 = vmul.f32 %v1129, 0.044715
        %v1264 = vmul.f32 %v1131, 0.044715
        %v1265 = vmul.f32 %v1022, 0.044715
        %v1266 = vmul.f32 %v1024, 0.044715
        %v1267 = vmul.f32 %v1135, 0.044715
        %v1268 = vmul.f32 %v1137, 0.044715
        %v1269 = vmul.f32 %v1026, 0.044715
        %v1270 = vmul.f32 %v1028, 0.044715
        %v1271 = vmul.f32 %v1139, 0.044715
        %v1272 = vmul.f32 %v1141, 0.044715
        %v1273 = vmul.f32 %v1032, 0.044715
        %v1274 = vmul.f32 %v1034, 0.044715
        %v1275 = vmul.f32 %v1145, 0.044715
        %v1276 = vmul.f32 %v1147, 0.044715
        %v1277 = vmul.f32 %v1036, 0.044715
        %v1278 = vmul.f32 %v1038, 0.044715
        %v1279 = vmul.f32 %v1149, 0.044715
        %v1280 = vmul.f32 %v1151, 0.044715
        %v1281 = vmul.f32 %v1217, %v962
        %v1282 = vmul.f32 %v1218, %v964
        %v1283 = vmul.f32 %v1219, %v1075
        %v1284 = vmul.f32 %v1220, %v1077
        %v1285 = vmul.f32 %v1221, %v966
        %v1286 = vmul.f32 %v1222, %v968
        %v1287 = vmul.f32 %v1223, %v1079
        %v1288 = vmul.f32 %v1224, %v1081
        %v1289 = vmul.f32 %v1225, %v972
        %v1290 = vmul.f32 %v1226, %v974
        %v1291 = vmul.f32 %v1227, %v1085
        %v1292 = vmul.f32 %v1228, %v1087
        %v1293 = vmul.f32 %v1229, %v976
        %v1294 = vmul.f32 %v1230, %v978
        %v1295 = vmul.f32 %v1231, %v1089
        %v1296 = vmul.f32 %v1232, %v1091
        %v1297 = vmul.f32 %v1233, %v982
        %v1298 = vmul.f32 %v1234, %v984
        %v1299 = vmul.f32 %v1235, %v1095
        %v1300 = vmul.f32 %v1236, %v1097
        %v1301 = vmul.f32 %v1237, %v986
        %v1302 = vmul.f32 %v1238, %v988
        %v1303 = vmul.f32 %v1239, %v1099
        %v1304 = vmul.f32 %v1240, %v1101
        %v1305 = vmul.f32 %v1241, %v992
        %v1306 = vmul.f32 %v1242, %v994
        %v1307 = vmul.f32 %v1243, %v1105
        %v1308 = vmul.f32 %v1244, %v1107
        %v1309 = vmul.f32 %v1245, %v996
        %v1310 = vmul.f32 %v1246, %v998
        %v1311 = vmul.f32 %v1247, %v1109
        %v1312 = vmul.f32 %v1248, %v1111
        %v1313 = vmul.f32 %v1249, %v1002
        %v1314 = vmul.f32 %v1250, %v1004
        %v1315 = vmul.f32 %v1251, %v1115
        %v1316 = vmul.f32 %v1252, %v1117
        %v1317 = vmul.f32 %v1253, %v1006
        %v1318 = vmul.f32 %v1254, %v1008
        %v1319 = vmul.f32 %v1255, %v1119
        %v1320 = vmul.f32 %v1256, %v1121
        %v1321 = vmul.f32 %v1257, %v1012
        %v1322 = vmul.f32 %v1258, %v1014
        %v1323 = vmul.f32 %v1259, %v1125
        %v1324 = vmul.f32 %v1260, %v1127
        %v1325 = vmul.f32 %v1261, %v1016
        %v1326 = vmul.f32 %v1262, %v1018
        %v1327 = vmul.f32 %v1263, %v1129
        %v1328 = vmul.f32 %v1264, %v1131
        %v1329 = vmul.f32 %v1265, %v1022
        %v1330 = vmul.f32 %v1266, %v1024
        %v1331 = vmul.f32 %v1267, %v1135
        %v1332 = vmul.f32 %v1268, %v1137
        %v1333 = vmul.f32 %v1269, %v1026
        %v1334 = vmul.f32 %v1270, %v1028
        %v1335 = vmul.f32 %v1271, %v1139
        %v1336 = vmul.f32 %v1272, %v1141
        %v1337 = vmul.f32 %v1273, %v1032
        %v1338 = vmul.f32 %v1274, %v1034
        %v1339 = vmul.f32 %v1275, %v1145
        %v1340 = vmul.f32 %v1276, %v1147
        %v1341 = vmul.f32 %v1277, %v1036
        %v1342 = vmul.f32 %v1278, %v1038
        %v1343 = vmul.f32 %v1279, %v1149
        %v1344 = vmul.f32 %v1280, %v1151
        %v1345 = vmul.f32 %v1281, %v962
        %v1346 = vmul.f32 %v1282, %v964
        %v1347 = vmul.f32 %v1283, %v1075
        %v1348 = vmul.f32 %v1284, %v1077
        %v1349 = vmul.f32 %v1285, %v966
        %v1350 = vmul.f32 %v1286, %v968
        %v1351 = vmul.f32 %v1287, %v1079
        %v1352 = vmul.f32 %v1288, %v1081
        %v1353 = vmul.f32 %v1289, %v972
        %v1354 = vmul.f32 %v1290, %v974
        %v1355 = vmul.f32 %v1291, %v1085
        %v1356 = vmul.f32 %v1292, %v1087
        %v1357 = vmul.f32 %v1293, %v976
        %v1358 = vmul.f32 %v1294, %v978
        %v1359 = vmul.f32 %v1295, %v1089
        %v1360 = vmul.f32 %v1296, %v1091
        %v1361 = vmul.f32 %v1297, %v982
        %v1362 = vmul.f32 %v1298, %v984
        %v1363 = vmul.f32 %v1299, %v1095
        %v1364 = vmul.f32 %v1300, %v1097
        %v1365 = vmul.f32 %v1301, %v986
        %v1366 = vmul.f32 %v1302, %v988
        %v1367 = vmul.f32 %v1303, %v1099
        %v1368 = vmul.f32 %v1304, %v1101
        %v1369 = vmul.f32 %v1305, %v992
        %v1370 = vmul.f32 %v1306, %v994
        %v1371 = vmul.f32 %v1307, %v1105
        %v1372 = vmul.f32 %v1308, %v1107
        %v1373 = vmul.f32 %v1309, %v996
        %v1374 = vmul.f32 %v1310, %v998
        %v1375 = vmul.f32 %v1311, %v1109
        %v1376 = vmul.f32 %v1312, %v1111
        %v1377 = vmul.f32 %v1313, %v1002
        %v1378 = vmul.f32 %v1314, %v1004
        %v1379 = vmul.f32 %v1315, %v1115
        %v1380 = vmul.f32 %v1316, %v1117
        %v1381 = vmul.f32 %v1317, %v1006
        %v1382 = vmul.f32 %v1318, %v1008
        %v1383 = vmul.f32 %v1319, %v1119
        %v1384 = vmul.f32 %v1320, %v1121
        %v1385 = vmul.f32 %v1321, %v1012
        %v1386 = vmul.f32 %v1322, %v1014
        %v1387 = vmul.f32 %v1323, %v1125
        %v1388 = vmul.f32 %v1324, %v1127
        %v1389 = vmul.f32 %v1325, %v1016
        %v1390 = vmul.f32 %v1326, %v1018
        %v1391 = vmul.f32 %v1327, %v1129
        %v1392 = vmul.f32 %v1328, %v1131
        %v1393 = vmul.f32 %v1329, %v1022
        %v1394 = vmul.f32 %v1330, %v1024
        %v1395 = vmul.f32 %v1331, %v1135
        %v1396 = vmul.f32 %v1332, %v1137
        %v1397 = vmul.f32 %v1333, %v1026
        %v1398 = vmul.f32 %v1334, %v1028
        %v1399 = vmul.f32 %v1335, %v1139
        %v1400 = vmul.f32 %v1336, %v1141
        %v1401 = vmul.f32 %v1337, %v1032
        %v1402 = vmul.f32 %v1338, %v1034
        %v1403 = vmul.f32 %v1339, %v1145
        %v1404 = vmul.f32 %v1340, %v1147
        %v1405 = vmul.f32 %v1341, %v1036
        %v1406 = vmul.f32 %v1342, %v1038
        %v1407 = vmul.f32 %v1343, %v1149
        %v1408 = vmul.f32 %v1344, %v1151
        %v1409 = vadd.f32 %v962, %v1345
        %v1410 = vadd.f32 %v964, %v1346
        %v1411 = vadd.f32 %v1075, %v1347
        %v1412 = vadd.f32 %v1077, %v1348
        %v1413 = vadd.f32 %v966, %v1349
        %v1414 = vadd.f32 %v968, %v1350
        %v1415 = vadd.f32 %v1079, %v1351
        %v1416 = vadd.f32 %v1081, %v1352
        %v1417 = vadd.f32 %v972, %v1353
        %v1418 = vadd.f32 %v974, %v1354
        %v1419 = vadd.f32 %v1085, %v1355
        %v1420 = vadd.f32 %v1087, %v1356
        %v1421 = vadd.f32 %v976, %v1357
        %v1422 = vadd.f32 %v978, %v1358
        %v1423 = vadd.f32 %v1089, %v1359
        %v1424 = vadd.f32 %v1091, %v1360
        %v1425 = vadd.f32 %v982, %v1361
        %v1426 = vadd.f32 %v984, %v1362
        %v1427 = vadd.f32 %v1095, %v1363
        %v1428 = vadd.f32 %v1097, %v1364
        %v1429 = vadd.f32 %v986, %v1365
        %v1430 = vadd.f32 %v988, %v1366
        %v1431 = vadd.f32 %v1099, %v1367
        %v1432 = vadd.f32 %v1101, %v1368
        %v1433 = vadd.f32 %v992, %v1369
        %v1434 = vadd.f32 %v994, %v1370
        %v1435 = vadd.f32 %v1105, %v1371
        %v1436 = vadd.f32 %v1107, %v1372
        %v1437 = vadd.f32 %v996, %v1373
        %v1438 = vadd.f32 %v998, %v1374
        %v1439 = vadd.f32 %v1109, %v1375
        %v1440 = vadd.f32 %v1111, %v1376
        %v1441 = vadd.f32 %v1002, %v1377
        %v1442 = vadd.f32 %v1004, %v1378
        %v1443 = vadd.f32 %v1115, %v1379
        %v1444 = vadd.f32 %v1117, %v1380
        %v1445 = vadd.f32 %v1006, %v1381
        %v1446 = vadd.f32 %v1008, %v1382
        %v1447 = vadd.f32 %v1119, %v1383
        %v1448 = vadd.f32 %v1121, %v1384
        %v1449 = vadd.f32 %v1012, %v1385
        %v1450 = vadd.f32 %v1014, %v1386
        %v1451 = vadd.f32 %v1125, %v1387
        %v1452 = vadd.f32 %v1127, %v1388
        %v1453 = vadd.f32 %v1016, %v1389
        %v1454 = vadd.f32 %v1018, %v1390
        %v1455 = vadd.f32 %v1129, %v1391
        %v1456 = vadd.f32 %v1131, %v1392
        %v1457 = vadd.f32 %v1022, %v1393
        %v1458 = vadd.f32 %v1024, %v1394
        %v1459 = vadd.f32 %v1135, %v1395
        %v1460 = vadd.f32 %v1137, %v1396
        %v1461 = vadd.f32 %v1026, %v1397
        %v1462 = vadd.f32 %v1028, %v1398
        %v1463 = vadd.f32 %v1139, %v1399
        %v1464 = vadd.f32 %v1141, %v1400
        %v1465 = vadd.f32 %v1032, %v1401
        %v1466 = vadd.f32 %v1034, %v1402
        %v1467 = vadd.f32 %v1145, %v1403
        %v1468 = vadd.f32 %v1147, %v1404
        %v1469 = vadd.f32 %v1036, %v1405
        %v1470 = vadd.f32 %v1038, %v1406
        %v1471 = vadd.f32 %v1149, %v1407
        %v1472 = vadd.f32 %v1151, %v1408
        %v1473 = vmul.f32 %v1409, 0.7978846
        %v1474 = vmul.f32 %v1410, 0.7978846
        %v1475 = vmul.f32 %v1411, 0.7978846
        %v1476 = vmul.f32 %v1412, 0.7978846
        %v1477 = vmul.f32 %v1413, 0.7978846
        %v1478 = vmul.f32 %v1414, 0.7978846
        %v1479 = vmul.f32 %v1415, 0.7978846
        %v1480 = vmul.f32 %v1416, 0.7978846
        %v1481 = vmul.f32 %v1417, 0.7978846
        %v1482 = vmul.f32 %v1418, 0.7978846
        %v1483 = vmul.f32 %v1419, 0.7978846
        %v1484 = vmul.f32 %v1420, 0.7978846
        %v1485 = vmul.f32 %v1421, 0.7978846
        %v1486 = vmul.f32 %v1422, 0.7978846
        %v1487 = vmul.f32 %v1423, 0.7978846
        %v1488 = vmul.f32 %v1424, 0.7978846
        %v1489 = vmul.f32 %v1425, 0.7978846
        %v1490 = vmul.f32 %v1426, 0.7978846
        %v1491 = vmul.f32 %v1427, 0.7978846
        %v1492 = vmul.f32 %v1428, 0.7978846
        %v1493 = vmul.f32 %v1429, 0.7978846
        %v1494 = vmul.f32 %v1430, 0.7978846
        %v1495 = vmul.f32 %v1431, 0.7978846
        %v1496 = vmul.f32 %v1432, 0.7978846
        %v1497 = vmul.f32 %v1433, 0.7978846
        %v1498 = vmul.f32 %v1434, 0.7978846
        %v1499 = vmul.f32 %v1435, 0.7978846
        %v1500 = vmul.f32 %v1436, 0.7978846
        %v1501 = vmul.f32 %v1437, 0.7978846
        %v1502 = vmul.f32 %v1438, 0.7978846
        %v1503 = vmul.f32 %v1439, 0.7978846
        %v1504 = vmul.f32 %v1440, 0.7978846
        %v1505 = vmul.f32 %v1441, 0.7978846
        %v1506 = vmul.f32 %v1442, 0.7978846
        %v1507 = vmul.f32 %v1443, 0.7978846
        %v1508 = vmul.f32 %v1444, 0.7978846
        %v1509 = vmul.f32 %v1445, 0.7978846
        %v1510 = vmul.f32 %v1446, 0.7978846
        %v1511 = vmul.f32 %v1447, 0.7978846
        %v1512 = vmul.f32 %v1448, 0.7978846
        %v1513 = vmul.f32 %v1449, 0.7978846
        %v1514 = vmul.f32 %v1450, 0.7978846
        %v1515 = vmul.f32 %v1451, 0.7978846
        %v1516 = vmul.f32 %v1452, 0.7978846
        %v1517 = vmul.f32 %v1453, 0.7978846
        %v1518 = vmul.f32 %v1454, 0.7978846
        %v1519 = vmul.f32 %v1455, 0.7978846
        %v1520 = vmul.f32 %v1456, 0.7978846
        %v1521 = vmul.f32 %v1457, 0.7978846
        %v1522 = vmul.f32 %v1458, 0.7978846
        %v1523 = vmul.f32 %v1459, 0.7978846
        %v1524 = vmul.f32 %v1460, 0.7978846
        %v1525 = vmul.f32 %v1461, 0.7978846
        %v1526 = vmul.f32 %v1462, 0.7978846
        %v1527 = vmul.f32 %v1463, 0.7978846
        %v1528 = vmul.f32 %v1464, 0.7978846
        %v1529 = vmul.f32 %v1465, 0.7978846
        %v1530 = vmul.f32 %v1466, 0.7978846
        %v1531 = vmul.f32 %v1467, 0.7978846
        %v1532 = vmul.f32 %v1468, 0.7978846
        %v1533 = vmul.f32 %v1469, 0.7978846
        %v1534 = vmul.f32 %v1470, 0.7978846
        %v1535 = vmul.f32 %v1471, 0.7978846
        %v1536 = vmul.f32 %v1472, 0.7978846
        %v1537 = vtanh.pop %v1473
        %v1538 = vtanh.pop %v1474
        %v1539 = vtanh.pop %v1475
        %v1540 = vtanh.pop %v1476
        %v1541 = vtanh.pop %v1477
        %v1542 = vtanh.pop %v1478
        %v1543 = vtanh.pop %v1479
        %v1544 = vtanh.pop %v1480
        %v1545 = vtanh.pop %v1481
        %v1546 = vtanh.pop %v1482
        %v1547 = vtanh.pop %v1483
        %v1548 = vtanh.pop %v1484
        %v1549 = vtanh.pop %v1485
        %v1550 = vtanh.pop %v1486
        %v1551 = vtanh.pop %v1487
        %v1552 = vtanh.pop %v1488
        %v1553 = vtanh.pop %v1489
        %v1554 = vtanh.pop %v1490
        %v1555 = vtanh.pop %v1491
        %v1556 = vtanh.pop %v1492
        %v1557 = vtanh.pop %v1493
        %v1558 = vtanh.pop %v1494
        %v1559 = vtanh.pop %v1495
        %v1560 = vtanh.pop %v1496
        %v1561 = vtanh.pop %v1497
        %v1562 = vtanh.pop %v1498
        %v1563 = vtanh.pop %v1499
        %v1564 = vtanh.pop %v1500
        %v1565 = vtanh.pop %v1501
        %v1566 = vtanh.pop %v1502
        %v1567 = vtanh.pop %v1503
        %v1568 = vtanh.pop %v1504
        %v1569 = vtanh.pop %v1505
        %v1570 = vtanh.pop %v1506
        %v1571 = vtanh.pop %v1507
        %v1572 = vtanh.pop %v1508
        %v1573 = vtanh.pop %v1509
        %v1574 = vtanh.pop %v1510
        %v1575 = vtanh.pop %v1511
        %v1576 = vtanh.pop %v1512
        %v1577 = vtanh.pop %v1513
        %v1578 = vtanh.pop %v1514
        %v1579 = vtanh.pop %v1515
        %v1580 = vtanh.pop %v1516
        %v1581 = vtanh.pop %v1517
        %v1582 = vtanh.pop %v1518
        %v1583 = vtanh.pop %v1519
        %v1584 = vtanh.pop %v1520
        %v1585 = vtanh.pop %v1521
        %v1586 = vtanh.pop %v1522
        %v1587 = vtanh.pop %v1523
        %v1588 = vtanh.pop %v1524
        %v1589 = vtanh.pop %v1525
        %v1590 = vtanh.pop %v1526
        %v1591 = vtanh.pop %v1527
        %v1592 = vtanh.pop %v1528
        %v1593 = vtanh.pop %v1529
        %v1594 = vtanh.pop %v1530
        %v1595 = vtanh.pop %v1531
        %v1596 = vtanh.pop %v1532
        %v1597 = vtanh.pop %v1533
        %v1598 = vtanh.pop %v1534
        %v1599 = vtanh.pop %v1535
        %v1600 = vtanh.pop %v1536
        %v1601 = vadd.f32 %v1537, 1.0
        %v1602 = vadd.f32 %v1538, 1.0
        %v1603 = vadd.f32 %v1539, 1.0
        %v1604 = vadd.f32 %v1540, 1.0
        %v1605 = vadd.f32 %v1541, 1.0
        %v1606 = vadd.f32 %v1542, 1.0
        %v1607 = vadd.f32 %v1543, 1.0
        %v1608 = vadd.f32 %v1544, 1.0
        %v1609 = vadd.f32 %v1545, 1.0
        %v1610 = vadd.f32 %v1546, 1.0
        %v1611 = vadd.f32 %v1547, 1.0
        %v1612 = vadd.f32 %v1548, 1.0
        %v1613 = vadd.f32 %v1549, 1.0
        %v1614 = vadd.f32 %v1550, 1.0
        %v1615 = vadd.f32 %v1551, 1.0
        %v1616 = vadd.f32 %v1552, 1.0
        %v1617 = vadd.f32 %v1553, 1.0
        %v1618 = vadd.f32 %v1554, 1.0
        %v1619 = vadd.f32 %v1555, 1.0
        %v1620 = vadd.f32 %v1556, 1.0
        %v1621 = vadd.f32 %v1557, 1.0
        %v1622 = vadd.f32 %v1558, 1.0
        %v1623 = vadd.f32 %v1559, 1.0
        %v1624 = vadd.f32 %v1560, 1.0
        %v1625 = vadd.f32 %v1561, 1.0
        %v1626 = vadd.f32 %v1562, 1.0
        %v1627 = vadd.f32 %v1563, 1.0
        %v1628 = vadd.f32 %v1564, 1.0
        %v1629 = vadd.f32 %v1565, 1.0
        %v1630 = vadd.f32 %v1566, 1.0
        %v1631 = vadd.f32 %v1567, 1.0
        %v1632 = vadd.f32 %v1568, 1.0
        %v1633 = vadd.f32 %v1569, 1.0
        %v1634 = vadd.f32 %v1570, 1.0
        %v1635 = vadd.f32 %v1571, 1.0
        %v1636 = vadd.f32 %v1572, 1.0
        %v1637 = vadd.f32 %v1573, 1.0
        %v1638 = vadd.f32 %v1574, 1.0
        %v1639 = vadd.f32 %v1575, 1.0
        %v1640 = vadd.f32 %v1576, 1.0
        %v1641 = vadd.f32 %v1577, 1.0
        %v1642 = vadd.f32 %v1578, 1.0
        %v1643 = vadd.f32 %v1579, 1.0
        %v1644 = vadd.f32 %v1580, 1.0
        %v1645 = vadd.f32 %v1581, 1.0
        %v1646 = vadd.f32 %v1582, 1.0
        %v1647 = vadd.f32 %v1583, 1.0
        %v1648 = vadd.f32 %v1584, 1.0
        %v1649 = vadd.f32 %v1585, 1.0
        %v1650 = vadd.f32 %v1586, 1.0
        %v1651 = vadd.f32 %v1587, 1.0
        %v1652 = vadd.f32 %v1588, 1.0
        %v1653 = vadd.f32 %v1589, 1.0
        %v1654 = vadd.f32 %v1590, 1.0
        %v1655 = vadd.f32 %v1591, 1.0
        %v1656 = vadd.f32 %v1592, 1.0
        %v1657 = vadd.f32 %v1593, 1.0
        %v1658 = vadd.f32 %v1594, 1.0
        %v1659 = vadd.f32 %v1595, 1.0
        %v1660 = vadd.f32 %v1596, 1.0
        %v1661 = vadd.f32 %v1597, 1.0
        %v1662 = vadd.f32 %v1598, 1.0
        %v1663 = vadd.f32 %v1599, 1.0
        %v1664 = vadd.f32 %v1600, 1.0
        %v1665 = vmul.f32 %v1153, %v1601
        %v1666 = vmul.f32 %v1154, %v1602
        %v1667 = vmul.f32 %v1155, %v1603
        %v1668 = vmul.f32 %v1156, %v1604
        %v1669 = vmul.f32 %v1157, %v1605
        %v1670 = vmul.f32 %v1158, %v1606
        %v1671 = vmul.f32 %v1159, %v1607
        %v1672 = vmul.f32 %v1160, %v1608
        %v1673 = vmul.f32 %v1161, %v1609
        %v1674 = vmul.f32 %v1162, %v1610
        %v1675 = vmul.f32 %v1163, %v1611
        %v1676 = vmul.f32 %v1164, %v1612
        %v1677 = vmul.f32 %v1165, %v1613
        %v1678 = vmul.f32 %v1166, %v1614
        %v1679 = vmul.f32 %v1167, %v1615
        %v1680 = vmul.f32 %v1168, %v1616
        %v1681 = vmul.f32 %v1169, %v1617
        %v1682 = vmul.f32 %v1170, %v1618
        %v1683 = vmul.f32 %v1171, %v1619
        %v1684 = vmul.f32 %v1172, %v1620
        %v1685 = vmul.f32 %v1173, %v1621
        %v1686 = vmul.f32 %v1174, %v1622
        %v1687 = vmul.f32 %v1175, %v1623
        %v1688 = vmul.f32 %v1176, %v1624
        %v1689 = vmul.f32 %v1177, %v1625
        %v1690 = vmul.f32 %v1178, %v1626
        %v1691 = vmul.f32 %v1179, %v1627
        %v1692 = vmul.f32 %v1180, %v1628
        %v1693 = vmul.f32 %v1181, %v1629
        %v1694 = vmul.f32 %v1182, %v1630
        %v1695 = vmul.f32 %v1183, %v1631
        %v1696 = vmul.f32 %v1184, %v1632
        %v1697 = vmul.f32 %v1185, %v1633
        %v1698 = vmul.f32 %v1186, %v1634
        %v1699 = vmul.f32 %v1187, %v1635
        %v1700 = vmul.f32 %v1188, %v1636
        %v1701 = vmul.f32 %v1189, %v1637
        %v1702 = vmul.f32 %v1190, %v1638
        %v1703 = vmul.f32 %v1191, %v1639
        %v1704 = vmul.f32 %v1192, %v1640
        %v1705 = vmul.f32 %v1193, %v1641
        %v1706 = vmul.f32 %v1194, %v1642
        %v1707 = vmul.f32 %v1195, %v1643
        %v1708 = vmul.f32 %v1196, %v1644
        %v1709 = vmul.f32 %v1197, %v1645
        %v1710 = vmul.f32 %v1198, %v1646
        %v1711 = vmul.f32 %v1199, %v1647
        %v1712 = vmul.f32 %v1200, %v1648
        %v1713 = vmul.f32 %v1201, %v1649
        %v1714 = vmul.f32 %v1202, %v1650
        %v1715 = vmul.f32 %v1203, %v1651
        %v1716 = vmul.f32 %v1204, %v1652
        %v1717 = vmul.f32 %v1205, %v1653
        %v1718 = vmul.f32 %v1206, %v1654
        %v1719 = vmul.f32 %v1207, %v1655
        %v1720 = vmul.f32 %v1208, %v1656
        %v1721 = vmul.f32 %v1209, %v1657
        %v1722 = vmul.f32 %v1210, %v1658
        %v1723 = vmul.f32 %v1211, %v1659
        %v1724 = vmul.f32 %v1212, %v1660
        %v1725 = vmul.f32 %v1213, %v1661
        %v1726 = vmul.f32 %v1214, %v1662
        %v1727 = vmul.f32 %v1215, %v1663
        %v1728 = vmul.f32 %v1216, %v1664
        %v1729 = vld [vmem:[#allocation2] sm:$0xff]
        %v1730 = vld [vmem:[#allocation2 + $0x8] sm:$0xff]
        %v1731 = vld [vmem:[#allocation2 + $0x10] sm:$0xff]
        %v1732 = vld [vmem:[#allocation2 + $0x18] sm:$0xff]
        %v1733 = vld [vmem:[#allocation2 + $0x20] sm:$0xff]
        %v1734 = vld [vmem:[#allocation2 + $0x28] sm:$0xff]
        %v1735 = vld [vmem:[#allocation2 + $0x30] sm:$0xff]
        %v1736 = vld [vmem:[#allocation2 + $0x38] sm:$0xff]
        %v1737 = vld [vmem:[#allocation2 + $0x40] sm:$0xff]
        %v1738 = vld [vmem:[#allocation2 + $0x48] sm:$0xff]
        %v1739 = vld [vmem:[#allocation2 + $0x50] sm:$0xff]
        %v1740 = vld [vmem:[#allocation2 + $0x58] sm:$0xff]
        %v1741 = vld [vmem:[#allocation2 + $0x60] sm:$0xff]
        %v1742 = vld [vmem:[#allocation2 + $0x68] sm:$0xff]
        %v1743 = vld [vmem:[#allocation2 + $0x70] sm:$0xff]
        %v1744 = vld [vmem:[#allocation2 + $0x78] sm:$0xff]
        %v1745 = vld [vmem:[#allocation2 + $0x80] sm:$0xff]
        %v1746 = vld [vmem:[#allocation2 + $0x88] sm:$0xff]
        %v1747 = vld [vmem:[#allocation2 + $0x90] sm:$0xff]
        %v1748 = vld [vmem:[#allocation2 + $0x98] sm:$0xff]
        %v1749 = vld [vmem:[#allocation2 + $0xa0] sm:$0xff]
        %v1750 = vld [vmem:[#allocation2 + $0xa8] sm:$0xff]
        %v1751 = vld [vmem:[#allocation2 + $0xb0] sm:$0xff]
        %v1752 = vld [vmem:[#allocation2 + $0xb8] sm:$0xff]
        %v1753 = vld [vmem:[#allocation2 + $0xc0] sm:$0xff]
        %v1754 = vld [vmem:[#allocation2 + $0xc8] sm:$0xff]
        %v1755 = vld [vmem:[#allocation2 + $0xd0] sm:$0xff]
        %v1756 = vld [vmem:[#allocation2 + $0xd8] sm:$0xff]
        %v1757 = vld [vmem:[#allocation2 + $0xe0] sm:$0xff]
        %v1758 = vld [vmem:[#allocation2 + $0xe8] sm:$0xff]
        %v1759 = vld [vmem:[#allocation2 + $0xf0] sm:$0xff]
        %v1760 = vld [vmem:[#allocation2 + $0xf8] sm:$0xff]
        %v1761 = vpack.c.bf16 %v1669, %v1665
        %v1762 = vpack.c.bf16 %v1670, %v1666
        %v1763 = vpack.c.bf16 %v1671, %v1667
        %v1764 = vpack.c.bf16 %v1672, %v1668
        %v1765 = vpack.c.bf16 %v1677, %v1673
        %v1766 = vpack.c.bf16 %v1678, %v1674
        %v1767 = vpack.c.bf16 %v1679, %v1675
        %v1768 = vpack.c.bf16 %v1680, %v1676
        %v1769 = vpack.c.bf16 %v1685, %v1681
        %v1770 = vpack.c.bf16 %v1686, %v1682
        %v1771 = vpack.c.bf16 %v1687, %v1683
        %v1772 = vpack.c.bf16 %v1688, %v1684
        %v1773 = vpack.c.bf16 %v1693, %v1689
        %v1774 = vpack.c.bf16 %v1694, %v1690
        %v1775 = vpack.c.bf16 %v1695, %v1691
        %v1776 = vpack.c.bf16 %v1696, %v1692
        %v1777 = vpack.c.bf16 %v1701, %v1697
        %v1778 = vpack.c.bf16 %v1702, %v1698
        %v1779 = vpack.c.bf16 %v1703, %v1699
        %v1780 = vpack.c.bf16 %v1704, %v1700
        %v1781 = vpack.c.bf16 %v1709, %v1705
        %v1782 = vpack.c.bf16 %v1710, %v1706
        %v1783 = vpack.c.bf16 %v1711, %v1707
        %v1784 = vpack.c.bf16 %v1712, %v1708
        %v1785 = vpack.c.bf16 %v1717, %v1713
        %v1786 = vpack.c.bf16 %v1718, %v1714
        %v1787 = vpack.c.bf16 %v1719, %v1715
        %v1788 = vpack.c.bf16 %v1720, %v1716
        %v1789 = vpack.c.bf16 %v1725, %v1721
        %v1790 = vpack.c.bf16 %v1726, %v1722
        %v1791 = vpack.c.bf16 %v1727, %v1723
        %v1792 = vpack.c.bf16 %v1728, %v1724
        %v1793 = vld [vmem:[%s330] sm:$0xff]
        %v1794 = vld [vmem:[%s330 + $0x8] sm:$0xff]
        %v1795 = vld [vmem:[%s330 + $0x10] sm:$0xff]
        %v1796 = vld [vmem:[%s330 + $0x18] sm:$0xff]
        %v1797 = vld [vmem:[%s330 + $0x20] sm:$0xff]
        %v1798 = vld [vmem:[%s330 + $0x28] sm:$0xff]
        %v1799 = vld [vmem:[%s330 + $0x30] sm:$0xff]
        %v1800 = vld [vmem:[%s330 + $0x38] sm:$0xff]
        %v1801 = vld [vmem:[%s330 + $0x40] sm:$0xff]
        %v1802 = vld [vmem:[%s330 + $0x48] sm:$0xff]
        %v1803 = vld [vmem:[%s330 + $0x50] sm:$0xff]
        %v1804 = vld [vmem:[%s330 + $0x58] sm:$0xff]
        %v1805 = vld [vmem:[%s330 + $0x60] sm:$0xff]
        %v1806 = vld [vmem:[%s330 + $0x68] sm:$0xff]
        %v1807 = vld [vmem:[%s330 + $0x70] sm:$0xff]
        %v1808 = vld [vmem:[%s330 + $0x78] sm:$0xff]
        %v1809 = vld [vmem:[%s330 + $0x80] sm:$0xff]
        %v1810 = vld [vmem:[%s330 + $0x88] sm:$0xff]
        %v1811 = vld [vmem:[%s330 + $0x90] sm:$0xff]
        %v1812 = vld [vmem:[%s330 + $0x98] sm:$0xff]
        %v1813 = vld [vmem:[%s330 + $0xa0] sm:$0xff]
        %v1814 = vld [vmem:[%s330 + $0xa8] sm:$0xff]
        %v1815 = vld [vmem:[%s330 + $0xb0] sm:$0xff]
        %v1816 = vld [vmem:[%s330 + $0xb8] sm:$0xff]
        %v1817 = vld [vmem:[%s330 + $0xc0] sm:$0xff]
        %v1818 = vld [vmem:[%s330 + $0xc8] sm:$0xff]
        %v1819 = vld [vmem:[%s330 + $0xd0] sm:$0xff]
        %v1820 = vld [vmem:[%s330 + $0xd8] sm:$0xff]
        %v1821 = vld [vmem:[%s330 + $0xe0] sm:$0xff]
        %v1822 = vld [vmem:[%s330 + $0xe8] sm:$0xff]
        %v1823 = vld [vmem:[%s330 + $0xf0] sm:$0xff]
        %v1824 = vld [vmem:[%s330 + $0xf8] sm:$0xff]
        %v1825 = vld [vmem:[%s330 + $0x100] sm:$0xff]
        %v1826 = vld [vmem:[%s330 + $0x108] sm:$0xff]
        %v1827 = vld [vmem:[%s330 + $0x110] sm:$0xff]
        %v1828 = vld [vmem:[%s330 + $0x118] sm:$0xff]
        %v1829 = vld [vmem:[%s330 + $0x120] sm:$0xff]
        %v1830 = vld [vmem:[%s330 + $0x128] sm:$0xff]
        %v1831 = vld [vmem:[%s330 + $0x130] sm:$0xff]
        %v1832 = vld [vmem:[%s330 + $0x138] sm:$0xff]
        %v1833 = vld [vmem:[%s330 + $0x140] sm:$0xff]
        %v1834 = vld [vmem:[%s330 + $0x148] sm:$0xff]
        %v1835 = vld [vmem:[%s330 + $0x150] sm:$0xff]
        %v1836 = vld [vmem:[%s330 + $0x158] sm:$0xff]
        %v1837 = vld [vmem:[%s330 + $0x160] sm:$0xff]
        %v1838 = vld [vmem:[%s330 + $0x168] sm:$0xff]
        %v1839 = vld [vmem:[%s330 + $0x170] sm:$0xff]
        %v1840 = vld [vmem:[%s330 + $0x178] sm:$0xff]
        %v1841 = vld [vmem:[%s330 + $0x180] sm:$0xff]
        %v1842 = vld [vmem:[%s330 + $0x188] sm:$0xff]
        %v1843 = vld [vmem:[%s330 + $0x190] sm:$0xff]
        %v1844 = vld [vmem:[%s330 + $0x198] sm:$0xff]
        %v1845 = vld [vmem:[%s330 + $0x1a0] sm:$0xff]
        %v1846 = vld [vmem:[%s330 + $0x1a8] sm:$0xff]
        %v1847 = vld [vmem:[%s330 + $0x1b0] sm:$0xff]
        %v1848 = vld [vmem:[%s330 + $0x1b8] sm:$0xff]
        %v1849 = vld [vmem:[%s330 + $0x1c0] sm:$0xff]
        %v1850 = vld [vmem:[%s330 + $0x1c8] sm:$0xff]
        %v1851 = vld [vmem:[%s330 + $0x1d0] sm:$0xff]
        %v1852 = vld [vmem:[%s330 + $0x1d8] sm:$0xff]
        %v1853 = vld [vmem:[%s330 + $0x1e0] sm:$0xff]
        %v1854 = vld [vmem:[%s330 + $0x1e8] sm:$0xff]
        %v1855 = vld [vmem:[%s330 + $0x1f0] sm:$0xff]
        %v1856 = vld [vmem:[%s330 + $0x1f8] sm:$0xff]
        %v1921 = vunpack.c.l.b16 %v1793
        %v1922 = vunpack.c.h.b16 %v1793
        %v1923 = vunpack.c.l.b16 %v1794
        %v1924 = vunpack.c.h.b16 %v1794
        %v1925 = vunpack.c.l.b16 %v1795
        %v1926 = vunpack.c.h.b16 %v1795
        %v1927 = vunpack.c.l.b16 %v1796
        %v1928 = vunpack.c.h.b16 %v1796
        %v1929 = vunpack.c.l.b16 %v1797
        %v1930 = vunpack.c.h.b16 %v1797
        %v1931 = vunpack.c.l.b16 %v1798
        %v1932 = vunpack.c.h.b16 %v1798
        %v1933 = vunpack.c.l.b16 %v1799
        %v1934 = vunpack.c.h.b16 %v1799
        %v1935 = vunpack.c.l.b16 %v1800
        %v1936 = vunpack.c.h.b16 %v1800
        %v1937 = vunpack.c.l.b16 %v1801
        %v1938 = vunpack.c.h.b16 %v1801
        %v1939 = vunpack.c.l.b16 %v1802
        %v1940 = vunpack.c.h.b16 %v1802
        %v1941 = vunpack.c.l.b16 %v1803
        %v1942 = vunpack.c.h.b16 %v1803
        %v1943 = vunpack.c.l.b16 %v1804
        %v1944 = vunpack.c.h.b16 %v1804
        %v1945 = vunpack.c.l.b16 %v1805
        %v1946 = vunpack.c.h.b16 %v1805
        %v1947 = vunpack.c.l.b16 %v1806
        %v1948 = vunpack.c.h.b16 %v1806
        %v1949 = vunpack.c.l.b16 %v1807
        %v1950 = vunpack.c.h.b16 %v1807
        %v1951 = vunpack.c.l.b16 %v1808
        %v1952 = vunpack.c.h.b16 %v1808
        %v1953 = vunpack.c.l.b16 %v1809
        %v1954 = vunpack.c.h.b16 %v1809
        %v1955 = vunpack.c.l.b16 %v1810
        %v1956 = vunpack.c.h.b16 %v1810
        %v1957 = vunpack.c.l.b16 %v1811
        %v1958 = vunpack.c.h.b16 %v1811
        %v1959 = vunpack.c.l.b16 %v1812
        %v1960 = vunpack.c.h.b16 %v1812
        %v1961 = vunpack.c.l.b16 %v1813
        %v1962 = vunpack.c.h.b16 %v1813
        %v1963 = vunpack.c.l.b16 %v1814
        %v1964 = vunpack.c.h.b16 %v1814
        %v1965 = vunpack.c.l.b16 %v1815
        %v1966 = vunpack.c.h.b16 %v1815
        %v1967 = vunpack.c.l.b16 %v1816
        %v1968 = vunpack.c.h.b16 %v1816
        %v1969 = vunpack.c.l.b16 %v1817
        %v1970 = vunpack.c.h.b16 %v1817
        %v1971 = vunpack.c.l.b16 %v1818
        %v1972 = vunpack.c.h.b16 %v1818
        %v1973 = vunpack.c.l.b16 %v1819
        %v1974 = vunpack.c.h.b16 %v1819
        %v1975 = vunpack.c.l.b16 %v1820
        %v1976 = vunpack.c.h.b16 %v1820
        %v1977 = vunpack.c.l.b16 %v1821
        %v1978 = vunpack.c.h.b16 %v1821
        %v1979 = vunpack.c.l.b16 %v1822
        %v1980 = vunpack.c.h.b16 %v1822
        %v1981 = vunpack.c.l.b16 %v1823
        %v1982 = vunpack.c.h.b16 %v1823
        %v1983 = vunpack.c.l.b16 %v1824
        %v1984 = vunpack.c.h.b16 %v1824
        %v1985 = vunpack.c.l.b16 %v1825
        %v1986 = vunpack.c.h.b16 %v1825
        %v1987 = vunpack.c.l.b16 %v1826
        %v1988 = vunpack.c.h.b16 %v1826
        %v1989 = vunpack.c.l.b16 %v1827
        %v1990 = vunpack.c.h.b16 %v1827
        %v1991 = vunpack.c.l.b16 %v1828
        %v1992 = vunpack.c.h.b16 %v1828
        %v1993 = vunpack.c.l.b16 %v1829
        %v1994 = vunpack.c.h.b16 %v1829
        %v1995 = vunpack.c.l.b16 %v1830
        %v1996 = vunpack.c.h.b16 %v1830
        %v1997 = vunpack.c.l.b16 %v1831
        %v1998 = vunpack.c.h.b16 %v1831
        %v1999 = vunpack.c.l.b16 %v1832
        %v2000 = vunpack.c.h.b16 %v1832
        %v2001 = vunpack.c.l.b16 %v1833
        %v2002 = vunpack.c.h.b16 %v1833
        %v2003 = vunpack.c.l.b16 %v1834
        %v2004 = vunpack.c.h.b16 %v1834
        %v2005 = vunpack.c.l.b16 %v1835
        %v2006 = vunpack.c.h.b16 %v1835
        %v2007 = vunpack.c.l.b16 %v1836
        %v2008 = vunpack.c.h.b16 %v1836
        %v2009 = vunpack.c.l.b16 %v1837
        %v2010 = vunpack.c.h.b16 %v1837
        %v2011 = vunpack.c.l.b16 %v1838
        %v2012 = vunpack.c.h.b16 %v1838
        %v2013 = vunpack.c.l.b16 %v1839
        %v2014 = vunpack.c.h.b16 %v1839
        %v2015 = vunpack.c.l.b16 %v1840
        %v2016 = vunpack.c.h.b16 %v1840
        %v2017 = vunpack.c.l.b16 %v1841
        %v2018 = vunpack.c.h.b16 %v1841
        %v2019 = vunpack.c.l.b16 %v1842
        %v2020 = vunpack.c.h.b16 %v1842
        %v2021 = vunpack.c.l.b16 %v1843
        %v2022 = vunpack.c.h.b16 %v1843
        %v2023 = vunpack.c.l.b16 %v1844
        %v2024 = vunpack.c.h.b16 %v1844
        %v2025 = vunpack.c.l.b16 %v1845
        %v2026 = vunpack.c.h.b16 %v1845
        %v2027 = vunpack.c.l.b16 %v1846
        %v2028 = vunpack.c.h.b16 %v1846
        %v2029 = vunpack.c.l.b16 %v1847
        %v2030 = vunpack.c.h.b16 %v1847
        %v2031 = vunpack.c.l.b16 %v1848
        %v2032 = vunpack.c.h.b16 %v1848
        %v2033 = vunpack.c.l.b16 %v1849
        %v2034 = vunpack.c.h.b16 %v1849
        %v2035 = vunpack.c.l.b16 %v1850
        %v2036 = vunpack.c.h.b16 %v1850
        %v2037 = vunpack.c.l.b16 %v1851
        %v2038 = vunpack.c.h.b16 %v1851
        %v2039 = vunpack.c.l.b16 %v1852
        %v2040 = vunpack.c.h.b16 %v1852
        %v2041 = vunpack.c.l.b16 %v1853
        %v2042 = vunpack.c.h.b16 %v1853
        %v2043 = vunpack.c.l.b16 %v1854
        %v2044 = vunpack.c.h.b16 %v1854
        %v2045 = vunpack.c.l.b16 %v1855
        %v2046 = vunpack.c.h.b16 %v1855
        %v2047 = vunpack.c.l.b16 %v1856
        %v2048 = vunpack.c.h.b16 %v1856
        %v2049 = vpack.c.b16 %v1923, %v1921
        %v2050 = vpack.c.b16 %v1924, %v1922
        %v2051 = vpack.c.b16 %v1927, %v1925
        %v2052 = vpack.c.b16 %v1928, %v1926
        %v2053 = vpack.c.b16 %v1931, %v1929
        %v2054 = vpack.c.b16 %v1932, %v1930
        %v2055 = vpack.c.b16 %v1935, %v1933
        %v2056 = vpack.c.b16 %v1936, %v1934
        %v2057 = vpack.c.b16 %v1939, %v1937
        %v2058 = vpack.c.b16 %v1940, %v1938
        %v2059 = vpack.c.b16 %v1943, %v1941
        %v2060 = vpack.c.b16 %v1944, %v1942
        %v2061 = vpack.c.b16 %v1947, %v1945
        %v2062 = vpack.c.b16 %v1948, %v1946
        %v2063 = vpack.c.b16 %v1951, %v1949
        %v2064 = vpack.c.b16 %v1952, %v1950
        %v2065 = vpack.c.b16 %v1955, %v1953
        %v2066 = vpack.c.b16 %v1956, %v1954
        %v2067 = vpack.c.b16 %v1959, %v1957
        %v2068 = vpack.c.b16 %v1960, %v1958
        %v2069 = vpack.c.b16 %v1963, %v1961
        %v2070 = vpack.c.b16 %v1964, %v1962
        %v2071 = vpack.c.b16 %v1967, %v1965
        %v2072 = vpack.c.b16 %v1968, %v1966
        %v2073 = vpack.c.b16 %v1971, %v1969
        %v2074 = vpack.c.b16 %v1972, %v1970
        %v2075 = vpack.c.b16 %v1975, %v1973
        %v2076 = vpack.c.b16 %v1976, %v1974
        %v2077 = vpack.c.b16 %v1979, %v1977
        %v2078 = vpack.c.b16 %v1980, %v1978
        %v2079 = vpack.c.b16 %v1983, %v1981
        %v2080 = vpack.c.b16 %v1984, %v1982
        %v2081 = vpack.c.b16 %v1987, %v1985
        %v2082 = vpack.c.b16 %v1988, %v1986
        %v2083 = vpack.c.b16 %v1991, %v1989
        %v2084 = vpack.c.b16 %v1992, %v1990
        %v2085 = vpack.c.b16 %v1995, %v1993
        %v2086 = vpack.c.b16 %v1996, %v1994
        %v2087 = vpack.c.b16 %v1999, %v1997
        %v2088 = vpack.c.b16 %v2000, %v1998
        %v2089 = vpack.c.b16 %v2003, %v2001
        %v2090 = vpack.c.b16 %v2004, %v2002
        %v2091 = vpack.c.b16 %v2007, %v2005
        %v2092 = vpack.c.b16 %v2008, %v2006
        %v2093 = vpack.c.b16 %v2011, %v2009
        %v2094 = vpack.c.b16 %v2012, %v2010
        %v2095 = vpack.c.b16 %v2015, %v2013
        %v2096 = vpack.c.b16 %v2016, %v2014
        %v2097 = vpack.c.b16 %v2019, %v2017
        %v2098 = vpack.c.b16 %v2020, %v2018
        %v2099 = vpack.c.b16 %v2023, %v2021
        %v2100 = vpack.c.b16 %v2024, %v2022
        %v2101 = vpack.c.b16 %v2027, %v2025
        %v2102 = vpack.c.b16 %v2028, %v2026
        %v2103 = vpack.c.b16 %v2031, %v2029
        %v2104 = vpack.c.b16 %v2032, %v2030
        %v2105 = vpack.c.b16 %v2035, %v2033
        %v2106 = vpack.c.b16 %v2036, %v2034
        %v2107 = vpack.c.b16 %v2039, %v2037
        %v2108 = vpack.c.b16 %v2040, %v2038
        %v2109 = vpack.c.b16 %v2043, %v2041
        %v2110 = vpack.c.b16 %v2044, %v2042
        %v2111 = vpack.c.b16 %v2047, %v2045
        %v2112 = vpack.c.b16 %v2048, %v2046
        %2177 = vmatprep.subr.bf16.mxu0 %v2050
        %2178 = vmatpush1.bf16.msra.mxu0 %v2049
        %2179 = vmatprep.subr.bf16.mxu0 %v2052
        %2180 = vmatpush1.bf16.msra.mxu0 %v2051
        %2181 = vmatprep.subr.bf16.mxu0 %v2054
        %2182 = vmatpush1.bf16.msra.mxu0 %v2053
        %2183 = vmatprep.subr.bf16.mxu0 %v2056
        %2184 = vmatpush1.bf16.msra.mxu0 %v2055
        %2185 = vmatprep.subr.bf16.mxu0 %v2058
        %2186 = vmatpush1.bf16.msra.mxu0 %v2057
        %2187 = vmatprep.subr.bf16.mxu0 %v2060
        %2188 = vmatpush1.bf16.msra.mxu0 %v2059
        %2189 = vmatprep.subr.bf16.mxu0 %v2062
        %2190 = vmatpush1.bf16.msra.mxu0 %v2061
        %2191 = vmatprep.subr.bf16.mxu0 %v2064
        %2192 = vmatpush1.bf16.msra.mxu0 %v2063
        %2193 = vmatprep.subr.bf16.mxu0 %v2066
        %2194 = vmatpush1.bf16.msra.mxu0 %v2065
        %2195 = vmatprep.subr.bf16.mxu0 %v2068
        %2196 = vmatpush1.bf16.msra.mxu0 %v2067
        %2197 = vmatprep.subr.bf16.mxu0 %v2070
        %2198 = vmatpush1.bf16.msra.mxu0 %v2069
        %2199 = vmatprep.subr.bf16.mxu0 %v2072
        %2200 = vmatpush1.bf16.msra.mxu0 %v2071
        %2201 = vmatprep.subr.bf16.mxu0 %v2074
        %2202 = vmatpush1.bf16.msra.mxu0 %v2073
        %2203 = vmatprep.subr.bf16.mxu0 %v2076
        %2204 = vmatpush1.bf16.msra.mxu0 %v2075
        %2205 = vmatprep.subr.bf16.mxu0 %v2078
        %2206 = vmatpush1.bf16.msra.mxu0 %v2077
        %2207 = vmatprep.subr.bf16.mxu0 %v2080
        %2208 = vmatpush1.bf16.msra.mxu0 %v2079
        %2209 = vmatprep.mubr.bf16.mxu0 %v1762
        %2210 = vmatmul.mubr.bf16.gmra.mrb[0].mxu0 %v1761
        %v2211 = vpop.f32.mrb[0].mxu0
        %v2212 = vadd.f32 0.0, %v2211
        %v2213 = vpop.f32.mrb[0].mxu0
        %v2214 = vadd.f32 0.0, %v2213
        %v2215 = vpop.f32.mrb[0].mxu0
        %v2216 = vadd.f32 0.0, %v2215
        %v2217 = vpop.f32.mrb[0].mxu0
        %v2218 = vadd.f32 0.0, %v2217
        %2219 = vmatprep.mubr.bf16.mxu0 %v1766
        %2220 = vmatmul.mubr.bf16.gmra.mrb[0].mxu0 %v1765
        %v2221 = vpop.f32.mrb[0].mxu0
        %v2222 = vadd.f32 0.0, %v2221
        %v2223 = vpop.f32.mrb[0].mxu0
        %v2224 = vadd.f32 0.0, %v2223
        %v2225 = vpop.f32.mrb[0].mxu0
        %v2226 = vadd.f32 0.0, %v2225
        %v2227 = vpop.f32.mrb[0].mxu0
        %v2228 = vadd.f32 0.0, %v2227
        %2229 = vmatprep.mubr.bf16.mxu0 %v1770
        %2230 = vmatmul.mubr.bf16.gmra.mrb[0].mxu0 %v1769
        %v2231 = vpop.f32.mrb[0].mxu0
        %v2232 = vadd.f32 0.0, %v2231
        %v2233 = vpop.f32.mrb[0].mxu0
        %v2234 = vadd.f32 0.0, %v2233
        %v2235 = vpop.f32.mrb[0].mxu0
        %v2236 = vadd.f32 0.0, %v2235
        %v2237 = vpop.f32.mrb[0].mxu0
        %v2238 = vadd.f32 0.0, %v2237
        %2239 = vmatprep.mubr.bf16.mxu0 %v1774
        %2240 = vmatmul.mubr.bf16.gmra.mrb[0].mxu0 %v1773
        %v2241 = vpop.f32.mrb[0].mxu0
        %v2242 = vadd.f32 0.0, %v2241
        %v2243 = vpop.f32.mrb[0].mxu0
        %v2244 = vadd.f32 0.0, %v2243
        %v2245 = vpop.f32.mrb[0].mxu0
        %v2246 = vadd.f32 0.0, %v2245
        %v2247 = vpop.f32.mrb[0].mxu0
        %v2248 = vadd.f32 0.0, %v2247
        %2249 = vmatprep.mubr.bf16.mxu0 %v1778
        %2250 = vmatmul.mubr.bf16.gmra.mrb[0].mxu0 %v1777
        %v2251 = vpop.f32.mrb[0].mxu0
        %v2252 = vadd.f32 0.0, %v2251
        %v2253 = vpop.f32.mrb[0].mxu0
        %v2254 = vadd.f32 0.0, %v2253
        %v2255 = vpop.f32.mrb[0].mxu0
        %v2256 = vadd.f32 0.0, %v2255
        %v2257 = vpop.f32.mrb[0].mxu0
        %v2258 = vadd.f32 0.0, %v2257
        %2259 = vmatprep.mubr.bf16.mxu0 %v1782
        %2260 = vmatmul.mubr.bf16.gmra.mrb[0].mxu0 %v1781
        %v2261 = vpop.f32.mrb[0].mxu0
        %v2262 = vadd.f32 0.0, %v2261
        %v2263 = vpop.f32.mrb[0].mxu0
        %v2264 = vadd.f32 0.0, %v2263
        %v2265 = vpop.f32.mrb[0].mxu0
        %v2266 = vadd.f32 0.0, %v2265
        %v2267 = vpop.f32.mrb[0].mxu0
        %v2268 = vadd.f32 0.0, %v2267
        %2269 = vmatprep.mubr.bf16.mxu0 %v1786
        %2270 = vmatmul.mubr.bf16.gmra.mrb[0].mxu0 %v1785
        %v2271 = vpop.f32.mrb[0].mxu0
        %v2272 = vadd.f32 0.0, %v2271
        %v2273 = vpop.f32.mrb[0].mxu0
        %v2274 = vadd.f32 0.0, %v2273
        %v2275 = vpop.f32.mrb[0].mxu0
        %v2276 = vadd.f32 0.0, %v2275
        %v2277 = vpop.f32.mrb[0].mxu0
        %v2278 = vadd.f32 0.0, %v2277
        %2279 = vmatprep.mubr.bf16.mxu0 %v1790
        %2280 = vmatmul.mubr.bf16.gmra.mrb[0].mxu0 %v1789
        %v2281 = vpop.f32.mrb[0].mxu0
        %v2282 = vadd.f32 0.0, %v2281
        %v2283 = vpop.f32.mrb[0].mxu0
        %v2284 = vadd.f32 0.0, %v2283
        %v2285 = vpop.f32.mrb[0].mxu0
        %v2286 = vadd.f32 0.0, %v2285
        %v2287 = vpop.f32.mrb[0].mxu0
        %v2288 = vadd.f32 0.0, %v2287
        %2289 = vdwg.mxu0
        %2290 = vmatprep.subr.bf16.mxu0 %v2082
        %2291 = vmatpush1.bf16.msra.mxu0 %v2081
        %2292 = vmatprep.subr.bf16.mxu0 %v2084
        %2293 = vmatpush1.bf16.msra.mxu0 %v2083
        %2294 = vmatprep.subr.bf16.mxu0 %v2086
        %2295 = vmatpush1.bf16.msra.mxu0 %v2085
        %2296 = vmatprep.subr.bf16.mxu0 %v2088
        %2297 = vmatpush1.bf16.msra.mxu0 %v2087
        %2298 = vmatprep.subr.bf16.mxu0 %v2090
        %2299 = vmatpush1.bf16.msra.mxu0 %v2089
        %2300 = vmatprep.subr.bf16.mxu0 %v2092
        %2301 = vmatpush1.bf16.msra.mxu0 %v2091
        %2302 = vmatprep.subr.bf16.mxu0 %v2094
        %2303 = vmatpush1.bf16.msra.mxu0 %v2093
        %2304 = vmatprep.subr.bf16.mxu0 %v2096
        %2305 = vmatpush1.bf16.msra.mxu0 %v2095
        %2306 = vmatprep.subr.bf16.mxu0 %v2098
        %2307 = vmatpush1.bf16.msra.mxu0 %v2097
        %2308 = vmatprep.subr.bf16.mxu0 %v2100
        %2309 = vmatpush1.bf16.msra.mxu0 %v2099
        %2310 = vmatprep.subr.bf16.mxu0 %v2102
        %2311 = vmatpush1.bf16.msra.mxu0 %v2101
        %2312 = vmatprep.subr.bf16.mxu0 %v2104
        %2313 = vmatpush1.bf16.msra.mxu0 %v2103
        %2314 = vmatprep.subr.bf16.mxu0 %v2106
        %2315 = vmatpush1.bf16.msra.mxu0 %v2105
        %2316 = vmatprep.subr.bf16.mxu0 %v2108
        %2317 = vmatpush1.bf16.msra.mxu0 %v2107
        %2318 = vmatprep.subr.bf16.mxu0 %v2110
        %2319 = vmatpush1.bf16.msra.mxu0 %v2109
        %2320 = vmatprep.subr.bf16.mxu0 %v2112
        %2321 = vmatpush1.bf16.msra.mxu0 %v2111
        %2322 = vmatprep.mubr.bf16.mxu0 %v1764
        %2323 = vmatmul.mubr.bf16.gmra.mrb[0].mxu0 %v1763
        %v2324 = vpop.f32.mrb[0].mxu0
        %v2325 = vadd.f32 %v2212, %v2324
        %v2326 = vpop.f32.mrb[0].mxu0
        %v2327 = vadd.f32 %v2214, %v2326
        %v2328 = vpop.f32.mrb[0].mxu0
        %v2329 = vadd.f32 %v2216, %v2328
        %v2330 = vpop.f32.mrb[0].mxu0
        %v2331 = vadd.f32 %v2218, %v2330
        %2332 = vmatprep.mubr.bf16.mxu0 %v1768
        %2333 = vmatmul.mubr.bf16.gmra.mrb[0].mxu0 %v1767
        %v2334 = vpop.f32.mrb[0].mxu0
        %v2335 = vadd.f32 %v2222, %v2334
        %v2336 = vpop.f32.mrb[0].mxu0
        %v2337 = vadd.f32 %v2224, %v2336
        %v2338 = vpop.f32.mrb[0].mxu0
        %v2339 = vadd.f32 %v2226, %v2338
        %v2340 = vpop.f32.mrb[0].mxu0
        %v2341 = vadd.f32 %v2228, %v2340
        %2342 = vmatprep.mubr.bf16.mxu0 %v1772
        %2343 = vmatmul.mubr.bf16.gmra.mrb[0].mxu0 %v1771
        %v2344 = vpop.f32.mrb[0].mxu0
        %v2345 = vadd.f32 %v2232, %v2344
        %v2346 = vpop.f32.mrb[0].mxu0
        %v2347 = vadd.f32 %v2234, %v2346
        %v2348 = vpop.f32.mrb[0].mxu0
        %v2349 = vadd.f32 %v2236, %v2348
        %v2350 = vpop.f32.mrb[0].mxu0
        %v2351 = vadd.f32 %v2238, %v2350
        %2352 = vmatprep.mubr.bf16.mxu0 %v1776
        %2353 = vmatmul.mubr.bf16.gmra.mrb[0].mxu0 %v1775
        %v2354 = vpop.f32.mrb[0].mxu0
        %v2355 = vadd.f32 %v2242, %v2354
        %v2356 = vpop.f32.mrb[0].mxu0
        %v2357 = vadd.f32 %v2244, %v2356
        %v2358 = vpop.f32.mrb[0].mxu0
        %v2359 = vadd.f32 %v2246, %v2358
        %v2360 = vpop.f32.mrb[0].mxu0
        %v2361 = vadd.f32 %v2248, %v2360
        %2362 = vmatprep.mubr.bf16.mxu0 %v1780
        %2363 = vmatmul.mubr.bf16.gmra.mrb[0].mxu0 %v1779
        %v2364 = vpop.f32.mrb[0].mxu0
        %v2365 = vadd.f32 %v2252, %v2364
        %v2366 = vpop.f32.mrb[0].mxu0
        %v2367 = vadd.f32 %v2254, %v2366
        %v2368 = vpop.f32.mrb[0].mxu0
        %v2369 = vadd.f32 %v2256, %v2368
        %v2370 = vpop.f32.mrb[0].mxu0
        %v2371 = vadd.f32 %v2258, %v2370
        %2372 = vmatprep.mubr.bf16.mxu0 %v1784
        %2373 = vmatmul.mubr.bf16.gmra.mrb[0].mxu0 %v1783
        %v2374 = vpop.f32.mrb[0].mxu0
        %v2375 = vadd.f32 %v2262, %v2374
        %v2376 = vpop.f32.mrb[0].mxu0
        %v2377 = vadd.f32 %v2264, %v2376
        %v2378 = vpop.f32.mrb[0].mxu0
        %v2379 = vadd.f32 %v2266, %v2378
        %v2380 = vpop.f32.mrb[0].mxu0
        %v2381 = vadd.f32 %v2268, %v2380
        %2382 = vmatprep.mubr.bf16.mxu0 %v1788
        %2383 = vmatmul.mubr.bf16.gmra.mrb[0].mxu0 %v1787
        %v2384 = vpop.f32.mrb[0].mxu0
        %v2385 = vadd.f32 %v2272, %v2384
        %v2386 = vpop.f32.mrb[0].mxu0
        %v2387 = vadd.f32 %v2274, %v2386
        %v2388 = vpop.f32.mrb[0].mxu0
        %v2389 = vadd.f32 %v2276, %v2388
        %v2390 = vpop.f32.mrb[0].mxu0
        %v2391 = vadd.f32 %v2278, %v2390
        %2392 = vmatprep.mubr.bf16.mxu0 %v1792
        %2393 = vmatmul.mubr.bf16.gmra.mrb[0].mxu0 %v1791
        %v2394 = vpop.f32.mrb[0].mxu0
        %v2395 = vadd.f32 %v2282, %v2394
        %v2396 = vpop.f32.mrb[0].mxu0
        %v2397 = vadd.f32 %v2284, %v2396
        %v2398 = vpop.f32.mrb[0].mxu0
        %v2399 = vadd.f32 %v2286, %v2398
        %v2400 = vpop.f32.mrb[0].mxu0
        %v2401 = vadd.f32 %v2288, %v2400
        %2402 = vdwg.mxu0
        %v2403 = vadd.f32 %v1729, %v2325
        %v2404 = vadd.f32 %v1730, %v2327
        %v2405 = vadd.f32 %v1731, %v2329
        %v2406 = vadd.f32 %v1732, %v2331
        %v2407 = vadd.f32 %v1733, %v2335
        %v2408 = vadd.f32 %v1734, %v2337
        %v2409 = vadd.f32 %v1735, %v2339
        %v2410 = vadd.f32 %v1736, %v2341
        %v2411 = vadd.f32 %v1737, %v2345
        %v2412 = vadd.f32 %v1738, %v2347
        %v2413 = vadd.f32 %v1739, %v2349
        %v2414 = vadd.f32 %v1740, %v2351
        %v2415 = vadd.f32 %v1741, %v2355
        %v2416 = vadd.f32 %v1742, %v2357
        %v2417 = vadd.f32 %v1743, %v2359
        %v2418 = vadd.f32 %v1744, %v2361
        %v2419 = vadd.f32 %v1745, %v2365
        %v2420 = vadd.f32 %v1746, %v2367
        %v2421 = vadd.f32 %v1747, %v2369
        %v2422 = vadd.f32 %v1748, %v2371
        %v2423 = vadd.f32 %v1749, %v2375
        %v2424 = vadd.f32 %v1750, %v2377
        %v2425 = vadd.f32 %v1751, %v2379
        %v2426 = vadd.f32 %v1752, %v2381
        %v2427 = vadd.f32 %v1753, %v2385
        %v2428 = vadd.f32 %v1754, %v2387
        %v2429 = vadd.f32 %v1755, %v2389
        %v2430 = vadd.f32 %v1756, %v2391
        %v2431 = vadd.f32 %v1757, %v2395
        %v2432 = vadd.f32 %v1758, %v2397
        %v2433 = vadd.f32 %v1759, %v2399
        %v2434 = vadd.f32 %v1760, %v2401
        %2435 = vst [vmem:[#allocation2] sm:$0xff] %v2403
        %2436 = vst [vmem:[#allocation2 + $0x8] sm:$0xff] %v2404
        %2437 = vst [vmem:[#allocation2 + $0x10] sm:$0xff] %v2405
        %2438 = vst [vmem:[#allocation2 + $0x18] sm:$0xff] %v2406
        %2439 = vst [vmem:[#allocation2 + $0x20] sm:$0xff] %v2407
        %2440 = vst [vmem:[#allocation2 + $0x28] sm:$0xff] %v2408
        %2441 = vst [vmem:[#allocation2 + $0x30] sm:$0xff] %v2409
        %2442 = vst [vmem:[#allocation2 + $0x38] sm:$0xff] %v2410
        %2443 = vst [vmem:[#allocation2 + $0x40] sm:$0xff] %v2411
        %2444 = vst [vmem:[#allocation2 + $0x48] sm:$0xff] %v2412
        %2445 = vst [vmem:[#allocation2 + $0x50] sm:$0xff] %v2413
        %2446 = vst [vmem:[#allocation2 + $0x58] sm:$0xff] %v2414
        %2447 = vst [vmem:[#allocation2 + $0x60] sm:$0xff] %v2415
        %2448 = vst [vmem:[#allocation2 + $0x68] sm:$0xff] %v2416
        %2449 = vst [vmem:[#allocation2 + $0x70] sm:$0xff] %v2417
        %2450 = vst [vmem:[#allocation2 + $0x78] sm:$0xff] %v2418
        %2451 = vst [vmem:[#allocation2 + $0x80] sm:$0xff] %v2419
        %2452 = vst [vmem:[#allocation2 + $0x88] sm:$0xff] %v2420
        %2453 = vst [vmem:[#allocation2 + $0x90] sm:$0xff] %v2421
        %2454 = vst [vmem:[#allocation2 + $0x98] sm:$0xff] %v2422
        %2455 = vst [vmem:[#allocation2 + $0xa0] sm:$0xff] %v2423
        %2456 = vst [vmem:[#allocation2 + $0xa8] sm:$0xff] %v2424
        %2457 = vst [vmem:[#allocation2 + $0xb0] sm:$0xff] %v2425
        %2458 = vst [vmem:[#allocation2 + $0xb8] sm:$0xff] %v2426
        %2459 = vst [vmem:[#allocation2 + $0xc0] sm:$0xff] %v2427
        %2460 = vst [vmem:[#allocation2 + $0xc8] sm:$0xff] %v2428
        %2461 = vst [vmem:[#allocation2 + $0xd0] sm:$0xff] %v2429
        %2462 = vst [vmem:[#allocation2 + $0xd8] sm:$0xff] %v2430
        %2463 = vst [vmem:[#allocation2 + $0xe0] sm:$0xff] %v2431
        %2464 = vst [vmem:[#allocation2 + $0xe8] sm:$0xff] %v2432
        %2465 = vst [vmem:[#allocation2 + $0xf0] sm:$0xff] %v2433
        %2466 = vst [vmem:[#allocation2 + $0xf8] sm:$0xff] %v2434
        %p2467 = scmp.eq.s32.totalorder %s33, 1
        // Predicated region
        $region61: #{_gptj_mlp_call.1} parent=39 // pred_check
          %p2468 = pneg %p2467
        $region62: #{_gptj_mlp_call.1} parent=39 // pred_check_branch
          %2470 = sbr.rel (%p2468) target = $region64
        $region63: #{_gptj_mlp_call.1} parent=39 // pred_region
          %v2471 = vld [vmem:[#allocation2] sm:$0xff]
          %v2472 = vld [vmem:[#allocation2 + $0x8] sm:$0xff]
          %v2473 = vld [vmem:[#allocation2 + $0x10] sm:$0xff]
          %v2474 = vld [vmem:[#allocation2 + $0x18] sm:$0xff]
          %v2475 = vld [vmem:[#allocation2 + $0x20] sm:$0xff]
          %v2476 = vld [vmem:[#allocation2 + $0x28] sm:$0xff]
          %v2477 = vld [vmem:[#allocation2 + $0x30] sm:$0xff]
          %v2478 = vld [vmem:[#allocation2 + $0x38] sm:$0xff]
          %v2479 = vld [vmem:[#allocation2 + $0x40] sm:$0xff]
          %v2480 = vld [vmem:[#allocation2 + $0x48] sm:$0xff]
          %v2481 = vld [vmem:[#allocation2 + $0x50] sm:$0xff]
          %v2482 = vld [vmem:[#allocation2 + $0x58] sm:$0xff]
          %v2483 = vld [vmem:[#allocation2 + $0x60] sm:$0xff]
          %v2484 = vld [vmem:[#allocation2 + $0x68] sm:$0xff]
          %v2485 = vld [vmem:[#allocation2 + $0x70] sm:$0xff]
          %v2486 = vld [vmem:[#allocation2 + $0x78] sm:$0xff]
          %v2487 = vld [vmem:[#allocation2 + $0x80] sm:$0xff]
          %v2488 = vld [vmem:[#allocation2 + $0x88] sm:$0xff]
          %v2489 = vld [vmem:[#allocation2 + $0x90] sm:$0xff]
          %v2490 = vld [vmem:[#allocation2 + $0x98] sm:$0xff]
          %v2491 = vld [vmem:[#allocation2 + $0xa0] sm:$0xff]
          %v2492 = vld [vmem:[#allocation2 + $0xa8] sm:$0xff]
          %v2493 = vld [vmem:[#allocation2 + $0xb0] sm:$0xff]
          %v2494 = vld [vmem:[#allocation2 + $0xb8] sm:$0xff]
          %v2495 = vld [vmem:[#allocation2 + $0xc0] sm:$0xff]
          %v2496 = vld [vmem:[#allocation2 + $0xc8] sm:$0xff]
          %v2497 = vld [vmem:[#allocation2 + $0xd0] sm:$0xff]
          %v2498 = vld [vmem:[#allocation2 + $0xd8] sm:$0xff]
          %v2499 = vld [vmem:[#allocation2 + $0xe0] sm:$0xff]
          %v2500 = vld [vmem:[#allocation2 + $0xe8] sm:$0xff]
          %v2501 = vld [vmem:[#allocation2 + $0xf0] sm:$0xff]
          %v2502 = vld [vmem:[#allocation2 + $0xf8] sm:$0xff]
          %2503 = vst [vmem:[%s371] sm:$0xff] %v2471
          %2504 = vst [vmem:[%s371 + $0x8] sm:$0xff] %v2472
          %2505 = vst [vmem:[%s371 + $0x10] sm:$0xff] %v2473
          %2506 = vst [vmem:[%s371 + $0x18] sm:$0xff] %v2474
          %2507 = vst [vmem:[%s371 + $0x20] sm:$0xff] %v2475
          %2508 = vst [vmem:[%s371 + $0x28] sm:$0xff] %v2476
          %2509 = vst [vmem:[%s371 + $0x30] sm:$0xff] %v2477
          %2510 = vst [vmem:[%s371 + $0x38] sm:$0xff] %v2478
          %2511 = vst [vmem:[%s371 + $0x40] sm:$0xff] %v2479
          %2512 = vst [vmem:[%s371 + $0x48] sm:$0xff] %v2480
          %2513 = vst [vmem:[%s371 + $0x50] sm:$0xff] %v2481
          %2514 = vst [vmem:[%s371 + $0x58] sm:$0xff] %v2482
          %2515 = vst [vmem:[%s371 + $0x60] sm:$0xff] %v2483
          %2516 = vst [vmem:[%s371 + $0x68] sm:$0xff] %v2484
          %2517 = vst [vmem:[%s371 + $0x70] sm:$0xff] %v2485
          %2518 = vst [vmem:[%s371 + $0x78] sm:$0xff] %v2486
          %2519 = vst [vmem:[%s371 + $0x80] sm:$0xff] %v2487
          %2520 = vst [vmem:[%s371 + $0x88] sm:$0xff] %v2488
          %2521 = vst [vmem:[%s371 + $0x90] sm:$0xff] %v2489
          %2522 = vst [vmem:[%s371 + $0x98] sm:$0xff] %v2490
          %2523 = vst [vmem:[%s371 + $0xa0] sm:$0xff] %v2491
          %2524 = vst [vmem:[%s371 + $0xa8] sm:$0xff] %v2492
          %2525 = vst [vmem:[%s371 + $0xb0] sm:$0xff] %v2493
          %2526 = vst [vmem:[%s371 + $0xb8] sm:$0xff] %v2494
          %2527 = vst [vmem:[%s371 + $0xc0] sm:$0xff] %v2495
          %2528 = vst [vmem:[%s371 + $0xc8] sm:$0xff] %v2496
          %2529 = vst [vmem:[%s371 + $0xd0] sm:$0xff] %v2497
          %2530 = vst [vmem:[%s371 + $0xd8] sm:$0xff] %v2498
          %2531 = vst [vmem:[%s371 + $0xe0] sm:$0xff] %v2499
          %2532 = vst [vmem:[%s371 + $0xe8] sm:$0xff] %v2500
          %2533 = vst [vmem:[%s371 + $0xf0] sm:$0xff] %v2501
          %2534 = vst [vmem:[%s371 + $0xf8] sm:$0xff] %v2502
        $region64: #{_gptj_mlp_call.1} parent=39 // pred_fallthru
          _
        %s2535 = sand.u32 %s173, 1
        %s2536 = scalar_lea.sflag [#allocation5], %s2535
        %s2537 = sand.u32 %s173, 1
        %s2538 = smul.addr %s2537, 256
        %s2539 = scalar_lea.vmem [#allocation11], %s2538
        // Predicated region
        $region65: #{_gptj_mlp_call.1} parent=39 // pred_check
          %p2540 = pneg %p183
        $region66: #{_gptj_mlp_call.1} parent=39 // pred_check_branch
          %2542 = sbr.rel (%p2540) target = $region68
        $region67: #{_gptj_mlp_call.1} parent=39 // pred_region
          %s2543 = smul.u32 16, %s32
          %s2545 = ssub.s32 4096, 4096
          %2546 = vsyncadd %s2536, %s2545
          %s2547 = smul.addr %s2543, 2
          %s2548 = smul.addr %s2547, 128
          %s2549 = scalar_lea.hbm %s5, %s2548
          %s2550 = sshll.u32 %s2539, 4
          %s2551 = int_to_ptr.vmem [resolvable:$true] %s2550
          %2556 = dma.vmem_to_hbm [thread:$0]  %s2551, 4096, %s2549, %s2536, 256, 256, 16
        $region68: #{_gptj_mlp_call.1} parent=39 // pred_fallthru
          _
      $region40: #{_gptj_mlp_call.1} parent=5 // pred_fallthru
        _
      %p2557 = scmp.le.s32.totalorder 2, %s23
      // Predicated region
      $region69: #{_gptj_mlp_call.1} parent=5 // pred_check
        %p2558 = pneg %p2557
      $region70: #{_gptj_mlp_call.1} parent=5 // pred_check_branch
        %2560 = sbr.rel (%p2558) target = $region72
      $region71: #{_gptj_mlp_call.1} parent=5 // pred_region
        %s2561 = ssub.s32 %s23, 2
        // Predicated region
        $region73: #{_gptj_mlp_call.1} parent=71 // pred_check
          %p2562 = pneg %p189
        $region74: #{_gptj_mlp_call.1} parent=71 // pred_check_branch
          %2564 = sbr.rel (%p2562) target = $region76
        $region75: #{_gptj_mlp_call.1} parent=71 // pred_region
          %s2565 = sand.u32 %s174, 1
          %s2566 = scalar_lea.sflag [#allocation5], %s2565
          %s2567 = sand.u32 %s174, 1
          %s2568 = smul.addr %s2567, 256
          %s2569 = scalar_lea.vmem [#allocation11], %s2568
          %2570 = dma.done %s2566, 4096
        $region76: #{_gptj_mlp_call.1} parent=71 // pred_fallthru
          _
      $region72: #{_gptj_mlp_call.1} parent=5 // pred_fallthru
        _
    $region6: #{_gptj_mlp_call.1} parent=1 // loop_footer
      %s27 = sadd.s32 1, %s23
    $region7: #{_gptj_mlp_call.1} parent=1 // loop_footer_branch
      %22 = sbr.rel target = $region3
    $region8: #{_gptj_mlp_call.1} parent=1 // loop_exit
      _
    %2571 = vsyncpa [#allocation4], 1
    %s2572 = scalar_lea.sflag [#allocation4], 1
    %2573 = vsyncpa %s2572, 1
    %2574 = vsyncpa [#allocation7], 1
    %s2575 = scalar_lea.sflag [#allocation7], 1
    %2576 = vsyncpa %s2575, 1
    %2577 = vsyncpa [#allocation10], 1
    %s2578 = scalar_lea.sflag [#allocation10], 1
    %2579 = vsyncpa %s2578, 1
    %2580 = vsyncpa [#allocation5], 1
    %s2581 = scalar_lea.sflag [#allocation5], 1
    %2582 = vsyncpa %s2581, 1

</llo_original>
